<compile_context>
chip_gen: v7x
topology: tpu7x:2x2x1
jax: 0.10.0
libtpu: 0.0.40
codegen_flags: <defaults>
</compile_context>

<pallas_src>
import math

import jax
import jax.numpy as jnp
from jax import lax
from jax.experimental import pallas as pl
from jax.experimental.pallas import tpu as pltpu


# ----------------------- config (small, synthetic) -----------------------
BATCH = 2
SEQ = 8
HIDDEN = 32
NUM_HEADS = 4
NUM_KV_HEADS = 2
HEAD_DIM = HIDDEN // NUM_HEADS             # 8
NUM_KV_GROUPS = NUM_HEADS // NUM_KV_HEADS  # 2
KV_DIM = NUM_KV_HEADS * HEAD_DIM           # 16
MAX_POS = 64
ROPE_THETA = 10000.0

# lane-aligned segment width of the fused projection weight
# (== HIDDEN at production sizes where HIDDEN is a multiple of 128)
SEG = ((HIDDEN + 127) // 128) * 128


def _rotate_half_matrix(head_dim):
    """(hd, hd) matrix R such that rotate_half(x) == x @ R (per head)."""
    half = head_dim // 2
    idx = jnp.arange(half)
    r = jnp.zeros((head_dim, head_dim), jnp.float32)
    r = r.at[idx + half, idx].set(-1.0)   # out[:, j]      = -x[:, j+half]
    r = r.at[idx, idx + half].set(1.0)    # out[:, j+half] =  x[:, j]
    return r


def prepare_fused_params(wq, wk, wv, wo, *, mxu_dtype=jnp.float32):
    """One-time wrapper-side weight folding (keep OFF the per-call path).

    Returns
      w_fused: (H, 5*SEG) = [ q | k_rep | v_rep | rot_half(q) | rot_half(k_rep) ]
               with 1/sqrt(head_dim) folded into q, GQA repeat folded into k/v,
               rotate_half folded in as extra columns, and every segment padded
               to a 128-lane-aligned start.
      wo:      (H, H) output projection.
    """
    H = NUM_HEADS * HEAD_DIM

    # fold GQA repeat_kv into the k/v projection weights (head h uses kv head h//G)
    head_to_kv = jnp.arange(NUM_HEADS) // NUM_KV_GROUPS
    col_idx = (head_to_kv[:, None] * HEAD_DIM
               + jnp.arange(HEAD_DIM)[None, :]).reshape(-1)
    wk_rep = wk[:, col_idx]                          # (H, H)
    wv_rep = wv[:, col_idx]                          # (H, H)

    # fold 1/sqrt(head_dim) into q (RoPE and the score matmul are linear in q)
    wq_s = wq * (1.0 / math.sqrt(HEAD_DIM))

    # fold rotate_half into extra projection columns
    r_full = jnp.kron(jnp.eye(NUM_HEADS, dtype=jnp.float32),
                      _rotate_half_matrix(HEAD_DIM))

    def pad_seg(w):                                  # (H, H) -> (H, SEG)
        return jnp.pad(w, ((0, 0), (0, SEG - H)))

    w_fused = jnp.concatenate(
        [pad_seg(wq_s), pad_seg(wk_rep), pad_seg(wv_rep),
         pad_seg(wq_s @ r_full), pad_seg(wk_rep @ r_full)], axis=1)

    return w_fused.astype(mxu_dtype), wo.astype(mxu_dtype)


def creek_attention_pallas(hidden_states, w_fused, wo, cos, sin,
                           *, mxu_dtype=jnp.float32):
    B, S, H = hidden_states.shape
    assert H == NUM_HEADS * HEAD_DIM
    assert w_fused.shape == (H, 5 * SEG)

    x2d = hidden_states.reshape(B * S, H).astype(mxu_dtype)
    cos = cos.astype(jnp.float32)
    sin = sin.astype(jnp.float32)

    def kernel(x_ref, w_ref, wo_ref, cos_ref, sin_ref, o_ref):
        # ---- fused q|k|v|rot(q)|rot(k) projection: ONE MXU matmul ----------
        proj = jnp.dot(x_ref[...], w_ref[...],
                       preferred_element_type=jnp.float32)        # (S, 5*SEG) f32

        q    = proj[:, 0 * SEG: 0 * SEG + H]     # 1/sqrt(hd) already folded in
        k    = proj[:, 1 * SEG: 1 * SEG + H]     # GQA repeat already folded in
        v    = proj[:, 2 * SEG: 2 * SEG + H]
        q_rh = proj[:, 3 * SEG: 3 * SEG + H]     # rotate_half(q) via extra cols
        k_rh = proj[:, 4 * SEG: 4 * SEG + H]     # rotate_half(k) via extra cols

        # ---- RoPE: broadcast (S, head_dim) tables across heads in-kernel ---
        cos_f = jnp.tile(cos_ref[...], (1, NUM_HEADS))             # (S, H)
        sin_f = jnp.tile(sin_ref[...], (1, NUM_HEADS))
        q_rot = q * cos_f + q_rh * sin_f                           # full-width f32 FMA
        k_rot = k * cos_f + k_rh * sin_f

        # ---- head-batched attention (no unrolled per-head python loop) -----
        # MXU-operand casts happen exactly once per matrix (hoisted).
        q_h = q_rot.reshape(S, NUM_HEADS, HEAD_DIM).transpose(1, 0, 2).astype(mxu_dtype)
        k_h = k_rot.reshape(S, NUM_HEADS, HEAD_DIM).transpose(1, 0, 2).astype(mxu_dtype)
        v_h = v.reshape(S, NUM_HEADS, HEAD_DIM).transpose(1, 0, 2).astype(mxu_dtype)

        s = jnp.einsum("hqd,hkd->hqk", q_h, k_h,
                       preferred_element_type=jnp.float32)         # (NH, S, S)

        # causal additive mask generated in-kernel (no (S,S) HBM input)
        row = lax.broadcasted_iota(jnp.int32, (S, S), 0)
        col = lax.broadcasted_iota(jnp.int32, (S, S), 1)
        mask = jnp.where(col <= row, jnp.float32(0.0), jnp.float32(-1e9))
        s = s + mask[None, :, :]

        # softmax in f32 (exact divide; pl.reciprocal(approx=True) at prod)
        m = jnp.max(s, axis=-1, keepdims=True)
        e = jnp.exp(s - m)
        d = jnp.sum(e, axis=-1, keepdims=True)
        p = (e / d).astype(mxu_dtype)

        out_h = jnp.einsum("hqk,hkd->hqd", p, v_h,
                           preferred_element_type=jnp.float32)     # (NH, S, hd)
        out = out_h.transpose(1, 0, 2).reshape(S, H).astype(mxu_dtype)

        # ---- single merged o_proj matmul + one lane-dense block store ------
        o_ref[...] = jnp.dot(out, wo_ref[...],
                             preferred_element_type=jnp.float32).astype(o_ref.dtype)

    out2d = pl.pallas_call(
        kernel,
        out_shape=jax.ShapeDtypeStruct((B * S, H), jnp.float32),
        grid_spec=pltpu.PrefetchScalarGridSpec(
            num_scalar_prefetch=0,
            grid=(B,),                                            # pipelined, parallel
            in_specs=[
                pl.BlockSpec((S, H), lambda b: (b, 0)),           # x: one batch elt/step
                pl.BlockSpec((H, 5 * SEG), lambda b: (0, 0)),     # fused qkv+rot W
                pl.BlockSpec((H, H), lambda b: (0, 0)),           # wo
                pl.BlockSpec((S, HEAD_DIM), lambda b: (0, 0)),    # cos (S, head_dim)
                pl.BlockSpec((S, HEAD_DIM), lambda b: (0, 0)),    # sin (S, head_dim)
            ],
            out_specs=pl.BlockSpec((S, H), lambda b: (b, 0)),
        ),
        compiler_params=pltpu.CompilerParams(
            dimension_semantics=("parallel",)),
    )(x2d, w_fused, wo, cos, sin)

    return out2d.reshape(B, S, H)


# ----------------- pure-JAX reference (for verification) -----------------
def creek_attention_ref(x, wq, wk, wv, wo, cos, sin):
    B, S, H = x.shape
    hp = lax.Precision.HIGHEST

    def rot_half(t):
        half = t.shape[-1] // 2
        return jnp.concatenate([-t[..., half:], t[..., :half]], axis=-1)

    q = jnp.dot(x, wq, precision=hp).reshape(B, S, NUM_HEADS, HEAD_DIM).transpose(0, 2, 1, 3)
    k = jnp.dot(x, wk, precision=hp).reshape(B, S, NUM_KV_HEADS, HEAD_DIM).transpose(0, 2, 1, 3)
    v = jnp.dot(x, wv, precision=hp).reshape(B, S, NUM_KV_HEADS, HEAD_DIM).transpose(0, 2, 1, 3)

    c = cos[None, None]
    s = sin[None, None]
    q = q * c + rot_half(q) * s
    k = k * c + rot_half(k) * s

    k = jnp.repeat(k, NUM_KV_GROUPS, axis=1)
    v = jnp.repeat(v, NUM_KV_GROUPS, axis=1)

    scores = jnp.einsum("bhqd,bhkd->bhqk", q, k, precision=hp) / math.sqrt(HEAD_DIM)
    causal = jnp.tril(jnp.ones((S, S), jnp.bool_))
    scores = scores + jnp.where(causal, 0.0, -1e9)[None, None]
    p = jax.nn.softmax(scores.astype(jnp.float32), axis=-1)
    out = jnp.einsum("bhqk,bhkd->bhqd", p, v, precision=hp)
    out = out.transpose(0, 2, 1, 3).reshape(B, S, H)
    return jnp.dot(out, wo, precision=hp)


if __name__ == "__main__":
    key = jax.random.PRNGKey(0)
    k1, k2, k3, k4, k5 = jax.random.split(key, 5)

    # deterministic synthetic parameters (stored [in, out], i.e. y = x @ W)
    scale = 1.0 / math.sqrt(HIDDEN)
    x = jax.random.normal(k1, (BATCH, SEQ, HIDDEN), jnp.float32)
    wq = jax.random.normal(k2, (HIDDEN, NUM_HEADS * HEAD_DIM), jnp.float32) * scale
    wk = jax.random.normal(k3, (HIDDEN, NUM_KV_HEADS * HEAD_DIM), jnp.float32) * scale
    wv = jax.random.normal(k4, (HIDDEN, NUM_KV_HEADS * HEAD_DIM), jnp.float32) * scale
    wo = jax.random.normal(k5, (NUM_HEADS * HEAD_DIM, HIDDEN), jnp.float32) * scale

    # creekRotaryEmbedding cache + position_ids gather — constant-table glue
    inv_freq = 1.0 / (ROPE_THETA ** (jnp.arange(0, HEAD_DIM, 2, dtype=jnp.float32) / HEAD_DIM))
    t = jnp.arange(MAX_POS, dtype=jnp.float32)
    freqs = jnp.einsum("i,j->ij", t, inv_freq)
    emb = jnp.concatenate([freqs, freqs], axis=-1)       # (MAX_POS, head_dim)
    position_ids = jnp.arange(SEQ)
    cos = jnp.cos(emb)[position_ids]                      # (S, head_dim)
    sin = jnp.sin(emb)[position_ids]

    # one-time weight folding, off the per-call path
    w_fused, wo_c = prepare_fused_params(wq, wk, wv, wo)

    out = creek_attention_pallas(x, w_fused, wo_c, cos, sin)
    out = jax.block_until_ready(out)

    ref = creek_attention_ref(x, wq, wk, wv, wo, cos, sin)
    assert out.shape == (BATCH, SEQ, HIDDEN)
    assert jnp.allclose(out, ref, atol=2e-4, rtol=2e-4), "mismatch vs reference"

    print("KERNEL_OK")
</pallas_src>

<mosaic_0001>
module attributes {stable_mosaic.version = 11 : i64} {
  func.func @kernel(%arg0: i32, %arg1: memref<8x32xf32, #tpu.memory_space<vmem>>, %arg2: memref<32x640xf32, #tpu.memory_space<vmem>>, %arg3: memref<32x32xf32, #tpu.memory_space<vmem>>, %arg4: memref<8x8xf32, #tpu.memory_space<vmem>>, %arg5: memref<8x8xf32, #tpu.memory_space<vmem>>, %arg6: memref<8x32xf32, #tpu.memory_space<vmem>>) attributes {dimension_semantics = [#tpu.dimension_semantics<parallel>], iteration_bounds = array<i64: 2>, scalar_prefetch = 0 : i64, scratch_operands = 0 : i64, tpu.core_type = #tpu.core_type<tc>, window_params = [{transform_indices = @transform_0, window_bounds = array<i64: 8, 32>}, {pipeline_mode = #tpu.pipeline_mode<synchronous>, transform_indices = @transform_1, window_bounds = array<i64: 32, 640>}, {pipeline_mode = #tpu.pipeline_mode<synchronous>, transform_indices = @transform_2, window_bounds = array<i64: 32, 32>}, {pipeline_mode = #tpu.pipeline_mode<synchronous>, transform_indices = @transform_3, window_bounds = array<i64: 8, 8>}, {pipeline_mode = #tpu.pipeline_mode<synchronous>, transform_indices = @transform_4, window_bounds = array<i64: 8, 8>}, {transform_indices = @transform_5, window_bounds = array<i64: 8, 32>}]} {
    %c0 = arith.constant 0 : index
    %c0_0 = arith.constant 0 : index
    %0 = vector.load %arg1[%c0, %c0_0] : memref<8x32xf32, #tpu.memory_space<vmem>>, vector<8x32xf32>
    %c0_1 = arith.constant 0 : index
    %c0_2 = arith.constant 0 : index
    %1 = vector.load %arg2[%c0_1, %c0_2] : memref<32x640xf32, #tpu.memory_space<vmem>>, vector<32x640xf32>
    %cst = arith.constant dense<0.000000e+00> : vector<8x640xf32>
    %2 = tpu.matmul %0, %1, %cst {dimension_numbers = #tpu.dot_dimension_numbers<[1], [0], [0], [1], [0, 0, 1, 1], [], []>} : vector<8x32xf32>, vector<32x640xf32>, vector<8x640xf32> -> vector<8x640xf32>
    %3 = vector.extract_strided_slice %2 {offsets = [0, 0], sizes = [8, 32], strides = [1, 1]} : vector<8x640xf32> to vector<8x32xf32>
    %4 = vector.extract_strided_slice %2 {offsets = [0, 128], sizes = [8, 32], strides = [1, 1]} : vector<8x640xf32> to vector<8x32xf32>
    %5 = vector.extract_strided_slice %2 {offsets = [0, 256], sizes = [8, 32], strides = [1, 1]} : vector<8x640xf32> to vector<8x32xf32>
    %6 = vector.extract_strided_slice %2 {offsets = [0, 384], sizes = [8, 32], strides = [1, 1]} : vector<8x640xf32> to vector<8x32xf32>
    %7 = vector.extract_strided_slice %2 {offsets = [0, 512], sizes = [8, 32], strides = [1, 1]} : vector<8x640xf32> to vector<8x32xf32>
    %c0_3 = arith.constant 0 : index
    %c0_4 = arith.constant 0 : index
    %8 = vector.load %arg4[%c0_3, %c0_4] : memref<8x8xf32, #tpu.memory_space<vmem>>, vector<8x8xf32>
    %9 = tpu.concatenate %8, %8, %8, %8 in 1 : vector<8x8xf32>, vector<8x8xf32>, vector<8x8xf32>, vector<8x8xf32> -> vector<8x32xf32>
    %c0_5 = arith.constant 0 : index
    %c0_6 = arith.constant 0 : index
    %10 = vector.load %arg5[%c0_5, %c0_6] : memref<8x8xf32, #tpu.memory_space<vmem>>, vector<8x8xf32>
    %11 = tpu.concatenate %10, %10, %10, %10 in 1 : vector<8x8xf32>, vector<8x8xf32>, vector<8x8xf32>, vector<8x8xf32> -> vector<8x32xf32>
    %12 = arith.mulf %3, %9 : vector<8x32xf32>
    %13 = arith.mulf %6, %11 : vector<8x32xf32>
    %14 = arith.addf %12, %13 : vector<8x32xf32>
    %15 = arith.mulf %4, %9 : vector<8x32xf32>
    %16 = arith.mulf %7, %11 : vector<8x32xf32>
    %17 = arith.addf %15, %16 : vector<8x32xf32>
    %18 = vector.shape_cast %14 : vector<8x32xf32> to vector<8x4x8xf32>
    %19 = tpu.transpose %18, [1, 0, 2] : vector<8x4x8xf32> -> vector<4x8x8xf32>
    %20 = vector.shape_cast %17 : vector<8x32xf32> to vector<8x4x8xf32>
    %21 = tpu.transpose %20, [1, 0, 2] : vector<8x4x8xf32> -> vector<4x8x8xf32>
    %22 = vector.shape_cast %5 : vector<8x32xf32> to vector<8x4x8xf32>
    %23 = tpu.transpose %22, [1, 0, 2] : vector<8x4x8xf32> -> vector<4x8x8xf32>
    "tpu.trace_start"() <{level = 10 : i32, message = "hqd,hkd->hqk"}> : () -> ()
    %cst_7 = arith.constant dense<0.000000e+00> : vector<4x8x8xf32>
    %24 = tpu.matmul %19, %21, %cst_7 {dimension_numbers = #tpu.dot_dimension_numbers<[2], [2], [1], [1], [0, 0, 0, 1, 1, 1], [0], [0]>} : vector<4x8x8xf32>, vector<4x8x8xf32>, vector<4x8x8xf32> -> vector<4x8x8xf32>
    "tpu.trace_stop"() : () -> ()
    %25 = tpu.iota {dimensions = array<i32: 0>} : vector<8x8xi32>
    %26 = tpu.iota {dimensions = array<i32: 1>} : vector<8x8xi32>
    %27 = arith.cmpi sle, %26, %25 : vector<8x8xi32>
    %cst_8 = arith.constant 0.000000e+00 : f32
    %cst_9 = arith.constant -1.000000e+09 : f32
    %28 = vector.broadcast %cst_8 : f32 to vector<8x8xf32>
    %29 = vector.broadcast %cst_9 : f32 to vector<8x8xf32>
    %30 = arith.select %27, %28, %29 : vector<8x8xi1>, vector<8x8xf32>
    %31 = vector.shape_cast %30 : vector<8x8xf32> to vector<1x8x8xf32>
    %32 = vector.broadcast %31 : vector<1x8x8xf32> to vector<4x8x8xf32>
    %33 = arith.addf %24, %32 : vector<4x8x8xf32>
    %cst_10 = arith.constant dense<0xFF800000> : vector<4x8xf32>
    %34 = vector.multi_reduction <maximumf>, %33, %cst_10 [2] : vector<4x8x8xf32> to vector<4x8xf32>
    %35 = vector.shape_cast %34 : vector<4x8xf32> to vector<4x8x1xf32>
    %36 = vector.broadcast %35 : vector<4x8x1xf32> to vector<4x8x8xf32>
    %37 = arith.subf %33, %36 : vector<4x8x8xf32>
    %38 = math.exp %37 : vector<4x8x8xf32>
    %cst_11 = arith.constant dense<0.000000e+00> : vector<4x8xf32>
    %39 = vector.multi_reduction <add>, %38, %cst_11 [2] : vector<4x8x8xf32> to vector<4x8xf32>
    %40 = vector.shape_cast %39 : vector<4x8xf32> to vector<4x8x1xf32>
    %41 = vector.broadcast %40 : vector<4x8x1xf32> to vector<4x8x8xf32>
    %42 = arith.divf %38, %41 : vector<4x8x8xf32>
    "tpu.trace_start"() <{level = 10 : i32, message = "hqk,hkd->hqd"}> : () -> ()
    %cst_12 = arith.constant dense<0.000000e+00> : vector<4x8x8xf32>
    %43 = tpu.matmul %42, %23, %cst_12 {dimension_numbers = #tpu.dot_dimension_numbers<[2], [1], [1], [2], [0, 0, 0, 1, 1, 2], [0], [0]>} : vector<4x8x8xf32>, vector<4x8x8xf32>, vector<4x8x8xf32> -> vector<4x8x8xf32>
    "tpu.trace_stop"() : () -> ()
    %44 = tpu.transpose %43, [1, 0, 2] : vector<4x8x8xf32> -> vector<8x4x8xf32>
    %45 = vector.shape_cast %44 : vector<8x4x8xf32> to vector<8x32xf32>
    %c0_13 = arith.constant 0 : index
    %c0_14 = arith.constant 0 : index
    %46 = vector.load %arg3[%c0_13, %c0_14] : memref<32x32xf32, #tpu.memory_space<vmem>>, vector<32x32xf32>
    %cst_15 = arith.constant dense<0.000000e+00> : vector<8x32xf32>
    %47 = tpu.matmul %45, %46, %cst_15 {dimension_numbers = #tpu.dot_dimension_numbers<[1], [0], [0], [1], [0, 0, 1, 1], [], []>} : vector<8x32xf32>, vector<32x32xf32>, vector<8x32xf32> -> vector<8x32xf32>
    %c0_16 = arith.constant 0 : index
    %c0_17 = arith.constant 0 : index
    %48 = vector.load %arg6[%c0_16, %c0_17] : memref<8x32xf32, #tpu.memory_space<vmem>>, vector<8x32xf32>
    tpu.vector_store %arg6[%c0_16, %c0_17], %47 {strides = array<i32>} : memref<8x32xf32, #tpu.memory_space<vmem>>, vector<8x32xf32>,
    return
  }
  func.func @transform_0(%arg0: i32) -> (i32, i32) {
    %c0_i32 = arith.constant 0 : i32
    %c0_i32_0 = arith.constant 0 : i32
    return %arg0, %c0_i32 : i32, i32
  }
  func.func @transform_1(%arg0: i32) -> (i32, i32) {
    %c0_i32 = arith.constant 0 : i32
    %c0_i32_0 = arith.constant 0 : i32
    %c0_i32_1 = arith.constant 0 : i32
    return %c0_i32, %c0_i32_0 : i32, i32
  }
  func.func @transform_2(%arg0: i32) -> (i32, i32) {
    %c0_i32 = arith.constant 0 : i32
    %c0_i32_0 = arith.constant 0 : i32
    %c0_i32_1 = arith.constant 0 : i32
    return %c0_i32, %c0_i32_0 : i32, i32
  }
  func.func @transform_3(%arg0: i32) -> (i32, i32) {
    %c0_i32 = arith.constant 0 : i32
    %c0_i32_0 = arith.constant 0 : i32
    %c0_i32_1 = arith.constant 0 : i32
    return %c0_i32, %c0_i32_0 : i32, i32
  }
  func.func @transform_4(%arg0: i32) -> (i32, i32) {
    %c0_i32 = arith.constant 0 : i32
    %c0_i32_0 = arith.constant 0 : i32
    %c0_i32_1 = arith.constant 0 : i32
    return %c0_i32, %c0_i32_0 : i32, i32
  }
  func.func @transform_5(%arg0: i32) -> (i32, i32) {
    %c0_i32 = arith.constant 0 : i32
    %c0_i32_0 = arith.constant 0 : i32
    return %arg0, %c0_i32 : i32, i32
  }
}

</mosaic_0001>

<llo_original>
// kernel: tpu_custom_call.1
$region0: #{tpu_custom_call.1}
  #allocation0 [shape = 'u32[]', space=smem, size = 0x4, offset = 0x4, fixed_abs, tag = 'smem constant byte address 0x4 - core index']
  #allocation1 [shape = 'u32[144,128]{1,0:T(1,128)}', space=vmem, size = 0x12000, scoped, tag = 'internal scratch']
  %s0 = inlined_call_operand.hbm [shape: f32[16,32], index: 0, kind: input, shape index: {}]
  %s1 = inlined_call_operand.hbm [shape: f32[32,640], index: 1, kind: input, shape index: {}]
  %s2 = inlined_call_operand.hbm [shape: f32[32,32], index: 2, kind: input, shape index: {}]
  %s3 = inlined_call_operand.vmem [shape: f32[8,8], index: 3, kind: input, shape index: {}]
  %s4 = inlined_call_operand.hbm [shape: f32[8,8], index: 4, kind: input, shape index: {}]
  %s5 = inlined_call_operand.hbm [shape: f32[16,32], index: 5, kind: output, shape index: {}]
  %s6 = sld [smem:[#allocation0]]
  $region69: #{tpu_custom_call.1} parent=0
    _
  %s8 = ssub.s32 1, %s6
  %s9 = scalar_select 0, %s8, %s6
  $region1: #{tpu_custom_call.1} parent=0
    #allocation2 [shape = 'u8[8192]{0}', space=vmem, size = 0x2000, scoped, tag = 'input window, operand 0']
    #allocation3 [shape = 's32[2]{0}', space=sflag, size = 0x8, scoped, tag = 'scoped memory for tpu_custom_call.1']
    #allocation4 [shape = 's32[2]{0}', space=sflag, size = 0x8, scoped, tag = 'scoped memory for tpu_custom_call.1']
    #allocation5 [shape = 'u8[81920]{0}', space=vmem, size = 0x14000, scoped, tag = 'input window, operand 1, single buffered']
    #allocation6 [shape = 's32[1]{0}', space=sflag, size = 0x4, scoped, tag = 'scoped memory for tpu_custom_call.1']
    #allocation7 [shape = 'u8[16384]{0}', space=vmem, size = 0x4000, scoped, tag = 'input window, operand 2, single buffered']
    #allocation8 [shape = 'u8[4096]{0}', space=vmem, size = 0x1000, scoped, tag = 'input window, operand 4, single buffered']
    #allocation9 [shape = 's32[1]{0}', space=sflag, size = 0x4, scoped, tag = 'scoped memory for tpu_custom_call.1']
    #allocation10 [shape = 'u8[8192]{0}', space=vmem, size = 0x2000, scoped, tag = 'output window, operand 0']
    %10 = vsyncpa [#allocation3], 0
    %s11 = scalar_lea.sflag [#allocation3], 1
    %12 = vsyncpa %s11, 0
    %13 = vsyncpa [#allocation6], 0
    %14 = vsyncpa [#allocation9], 0
    %15 = vsyncpa [#allocation4], 0
    %s16 = scalar_lea.sflag [#allocation4], 1
    %17 = vsyncpa %s16, 0
    loop: start=0, step=1, limit=4
    $region2: #{tpu_custom_call.1} parent=1 // loop_pre_header
      _
    $region3: #{tpu_custom_call.1} parent=1 // loop_header
      %s19 = sphi 0, %s23
      %p20 = scmp.ge.s32.totalorder %s19, 4
      %s29 = sphi 0, %s31
      %s32 = sphi 0, %s29
      %s33 = sphi 0, %s32
      %s49 = sphi 0, %s33
      %s53 = sphi 0, %s53
      %s55 = sphi 0, %s53
      %s56 = sphi 0, %s55
      %s70 = sphi 0, %s56
      %s74 = sphi 0, %s74
      %s76 = sphi 0, %s74
      %s77 = sphi 0, %s76
      %s91 = sphi 0, %s77
      %s95 = sphi 0, %s95
      %s97 = sphi 0, %s95
      %s98 = sphi 0, %s97
      %s112 = sphi 0, %s98
      %s116 = sphi 0, %s116
      %s118 = sphi 0, %s116
      %s119 = sphi 0, %s118
      %s133 = sphi 0, %s119
      %s139 = sphi 0, %s141
      %s142 = sphi 0, %s139
      %s143 = sphi 0, %s142
      %s159 = sphi 0, %s143
    $region4: #{tpu_custom_call.1} parent=1 // loop_header_branch
      %22 = sbr.rel (%p20) target = $region8
    $region5: #{tpu_custom_call.1} parent=1 // loop_body
      %s24 = ssub.s32 %s19, 1
      %s25 = ssub.s32 %s19, 2
      %s26 = sadd.s32 %s19, 1
      %s27 = ssub.s32 %s19, %s26
      %p28 = scmp.eq.s32.totalorder %s27, 0
      %s30 = sadd.s32 %s29, 1
      %s31 = scalar_select %p28, %s29, %s30
      %p34 = pneg %p28
      %p35 = scmp.eq.s32.totalorder %s19, 1
      %p36 = por %p34, %p35
      %p37 = scmp.ne.s32.totalorder %s29, %s32
      %p38 = scmp.eq.s32.totalorder %s19, 0
      %p39 = por %p37, %p38
      %p40 = scmp.ne.s32.totalorder %s29, %s32
      %p41 = scmp.eq.s32.totalorder %s24, 1
      %p42 = por %p40, %p41
      %p43 = scmp.ne.s32.totalorder %s32, %s33
      %p44 = scmp.eq.s32.totalorder %s24, 0
      %p45 = por %p43, %p44
      %p46 = scmp.ne.s32.totalorder %s32, %s33
      %p47 = scmp.eq.s32.totalorder %s25, 1
      %p48 = por %p46, %p47
      %p50 = scmp.ne.s32.totalorder %s33, %s49
      %p51 = scmp.eq.s32.totalorder %s25, 0
      %p52 = por %p50, %p51
      %s54 = sadd.s32 %s53, 1
      %p57 = scmp.eq.s32.totalorder %s19, 1
      %p58 = scmp.ne.s32.totalorder %s53, %s55
      %p59 = scmp.eq.s32.totalorder %s19, 0
      %p60 = por %p58, %p59
      %p61 = scmp.ne.s32.totalorder %s53, %s55
      %p62 = scmp.eq.s32.totalorder %s24, 1
      %p63 = por %p61, %p62
      %p64 = scmp.ne.s32.totalorder %s55, %s56
      %p65 = scmp.eq.s32.totalorder %s24, 0
      %p66 = por %p64, %p65
      %p67 = scmp.ne.s32.totalorder %s55, %s56
      %p68 = scmp.eq.s32.totalorder %s25, 1
      %p69 = por %p67, %p68
      %p71 = scmp.ne.s32.totalorder %s56, %s70
      %p72 = scmp.eq.s32.totalorder %s25, 0
      %p73 = por %p71, %p72
      %s75 = sadd.s32 %s74, 1
      %p78 = scmp.eq.s32.totalorder %s19, 1
      %p79 = scmp.ne.s32.totalorder %s74, %s76
      %p80 = scmp.eq.s32.totalorder %s19, 0
      %p81 = por %p79, %p80
      %p82 = scmp.ne.s32.totalorder %s74, %s76
      %p83 = scmp.eq.s32.totalorder %s24, 1
      %p84 = por %p82, %p83
      %p85 = scmp.ne.s32.totalorder %s76, %s77
      %p86 = scmp.eq.s32.totalorder %s24, 0
      %p87 = por %p85, %p86
      %p88 = scmp.ne.s32.totalorder %s76, %s77
      %p89 = scmp.eq.s32.totalorder %s25, 1
      %p90 = por %p88, %p89
      %p92 = scmp.ne.s32.totalorder %s77, %s91
      %p93 = scmp.eq.s32.totalorder %s25, 0
      %p94 = por %p92, %p93
      %s96 = sadd.s32 %s95, 1
      %p99 = scmp.eq.s32.totalorder %s19, 1
      %p100 = scmp.ne.s32.totalorder %s95, %s97
      %p101 = scmp.eq.s32.totalorder %s19, 0
      %p102 = por %p100, %p101
      %p103 = scmp.ne.s32.totalorder %s95, %s97
      %p104 = scmp.eq.s32.totalorder %s24, 1
      %p105 = por %p103, %p104
      %p106 = scmp.ne.s32.totalorder %s97, %s98
      %p107 = scmp.eq.s32.totalorder %s24, 0
      %p108 = por %p106, %p107
      %p109 = scmp.ne.s32.totalorder %s97, %s98
      %p110 = scmp.eq.s32.totalorder %s25, 1
      %p111 = por %p109, %p110
      %p113 = scmp.ne.s32.totalorder %s98, %s112
      %p114 = scmp.eq.s32.totalorder %s25, 0
      %p115 = por %p113, %p114
      %s117 = sadd.s32 %s116, 1
      %p120 = scmp.eq.s32.totalorder %s19, 1
      %p121 = scmp.ne.s32.totalorder %s116, %s118
      %p122 = scmp.eq.s32.totalorder %s19, 0
      %p123 = por %p121, %p122
      %p124 = scmp.ne.s32.totalorder %s116, %s118
      %p125 = scmp.eq.s32.totalorder %s24, 1
      %p126 = por %p124, %p125
      %p127 = scmp.ne.s32.totalorder %s118, %s119
      %p128 = scmp.eq.s32.totalorder %s24, 0
      %p129 = por %p127, %p128
      %p130 = scmp.ne.s32.totalorder %s118, %s119
      %p131 = scmp.eq.s32.totalorder %s25, 1
      %p132 = por %p130, %p131
      %p134 = scmp.ne.s32.totalorder %s119, %s133
      %p135 = scmp.eq.s32.totalorder %s25, 0
      %p136 = por %p134, %p135
      %s137 = ssub.s32 %s19, %s26
      %p138 = scmp.eq.s32.totalorder %s137, 0
      %s140 = sadd.s32 %s139, 1
      %s141 = scalar_select %p138, %s139, %s140
      %p144 = pneg %p138
      %p145 = scmp.eq.s32.totalorder %s19, 1
      %p146 = por %p144, %p145
      %p147 = scmp.ne.s32.totalorder %s139, %s142
      %p148 = scmp.eq.s32.totalorder %s19, 0
      %p149 = por %p147, %p148
      %p150 = scmp.ne.s32.totalorder %s139, %s142
      %p151 = scmp.eq.s32.totalorder %s24, 1
      %p152 = por %p150, %p151
      %p153 = scmp.ne.s32.totalorder %s142, %s143
      %p154 = scmp.eq.s32.totalorder %s24, 0
      %p155 = por %p153, %p154
      %p156 = scmp.ne.s32.totalorder %s142, %s143
      %p157 = scmp.eq.s32.totalorder %s25, 1
      %p158 = por %p156, %p157
      %p160 = scmp.ne.s32.totalorder %s143, %s159
      %p161 = scmp.eq.s32.totalorder %s25, 0
      %p162 = por %p160, %p161
      %p163 = scmp.le.s32.totalorder 1, %s19
      %p164 = scmp.lt.s32.totalorder %s19, 3
      %p165 = pnand %p163, %p164
      %p166 = pneg %p165
      // Predicated region
      $region9: #{tpu_custom_call.1} parent=5 // pred_check
        _
      $region10: #{tpu_custom_call.1} parent=5 // pred_check_branch
        %168 = sbr.rel (%p165) target = $region12
      $region11: #{tpu_custom_call.1} parent=5 // pred_region
        %s169 = ssub.s32 %s19, 1
        // Predicated region
        $region13: #{tpu_custom_call.1} parent=11 // pred_check
          %p170 = pneg %p66
        $region14: #{tpu_custom_call.1} parent=11 // pred_check_branch
          %172 = sbr.rel (%p170) target = $region16
        $region15: #{tpu_custom_call.1} parent=11 // pred_region
          %s174 = ssub.s32 2560, 2560
          %175 = vsyncadd [#allocation6], %s174
          %s176 = sshll.u32 [#allocation5], 4
          %s177 = int_to_ptr.vmem [resolvable:$true] %s176
          %182 = dma.hbm_to_vmem [thread:$0]  %s1, 2560, %s177, [#allocation6], 640, 640, 40
        $region16: #{tpu_custom_call.1} parent=11 // pred_fallthru
          _
        // Predicated region
        $region17: #{tpu_custom_call.1} parent=11 // pred_check
          %p183 = pneg %p87
        $region18: #{tpu_custom_call.1} parent=11 // pred_check_branch
          %185 = sbr.rel (%p183) target = $region20
        $region19: #{tpu_custom_call.1} parent=11 // pred_region
          %s187 = ssub.s32 512, 512
          %188 = vsyncadd [#allocation6], %s187
          %s189 = sshll.u32 [#allocation7], 4
          %s190 = int_to_ptr.vmem [resolvable:$true] %s189
          %195 = dma.hbm_to_vmem [thread:$0]  %s2, 512, %s190, [#allocation6], 128, 128, 8
        $region20: #{tpu_custom_call.1} parent=11 // pred_fallthru
          _
        // Predicated region
        $region21: #{tpu_custom_call.1} parent=11 // pred_check
          %p196 = pneg %p108
        $region22: #{tpu_custom_call.1} parent=11 // pred_check_branch
          %198 = sbr.rel (%p196) target = $region24
        $region23: #{tpu_custom_call.1} parent=11 // pred_region
          _
        $region24: #{tpu_custom_call.1} parent=11 // pred_fallthru
          _
        // Predicated region
        $region25: #{tpu_custom_call.1} parent=11 // pred_check
          %p199 = pneg %p129
        $region26: #{tpu_custom_call.1} parent=11 // pred_check_branch
          %201 = sbr.rel (%p199) target = $region28
        $region27: #{tpu_custom_call.1} parent=11 // pred_region
          %s203 = ssub.s32 128, 128
          %204 = vsyncadd [#allocation9], %s203
          %s206 = sshll.u32 [#allocation8], 4
          %s207 = int_to_ptr.vmem [resolvable:$true] %s206
          %209 = dma.hbm_to_vmem [thread:$0]  %s4, 128, %s207, [#allocation9]
        $region28: #{tpu_custom_call.1} parent=11 // pred_fallthru
          _
      $region12: #{tpu_custom_call.1} parent=5 // pred_fallthru
        _
      %p210 = scmp.lt.s32.totalorder %s19, 2
      // Predicated region
      $region29: #{tpu_custom_call.1} parent=5 // pred_check
        %p211 = pneg %p210
      $region30: #{tpu_custom_call.1} parent=5 // pred_check_branch
        %213 = sbr.rel (%p211) target = $region32
      $region31: #{tpu_custom_call.1} parent=5 // pred_region
        // Predicated region
        $region33: #{tpu_custom_call.1} parent=31 // pred_check
          %p214 = pneg %p39
        $region34: #{tpu_custom_call.1} parent=31 // pred_check_branch
          %216 = sbr.rel (%p214) target = $region36
        $region35: #{tpu_custom_call.1} parent=31 // pred_region
          %s217 = sand.u32 %s29, 1
          %s218 = scalar_lea.sflag [#allocation3], %s217
          %s219 = sand.u32 %s29, 1
          %s220 = smul.addr %s219, 8
          %s221 = scalar_lea.vmem [#allocation2], %s220
          %s223 = ssub.s32 128, 128
          %224 = vsyncadd %s218, %s223
          %s225 = smul.addr %s19, 128
          %s226 = scalar_lea.hbm %s0, %s225
          %s228 = sshll.u32 %s221, 4
          %s229 = int_to_ptr.vmem [resolvable:$true] %s228
          %231 = dma.hbm_to_vmem [thread:$0]  %s226, 128, %s229, %s218
        $region36: #{tpu_custom_call.1} parent=31 // pred_fallthru
          _
      $region32: #{tpu_custom_call.1} parent=5 // pred_fallthru
        _
      %p232 = scmp.le.s32.totalorder 1, %s19
      %p233 = scmp.lt.s32.totalorder %s19, 3
      %p234 = pnand %p232, %p233
      %p235 = pneg %p234
      // Predicated region
      $region37: #{tpu_custom_call.1} parent=5 // pred_check
        _
      $region38: #{tpu_custom_call.1} parent=5 // pred_check_branch
        %237 = sbr.rel (%p234) target = $region40
      $region39: #{tpu_custom_call.1} parent=5 // pred_region
        %s238 = ssub.s32 %s19, 1
        %s239 = sand.u32 %s32, 1
        %s240 = scalar_lea.sflag [#allocation3], %s239
        %s241 = sand.u32 %s32, 1
        %s242 = smul.addr %s241, 8
        %s243 = scalar_lea.vmem [#allocation2], %s242
        // Predicated region
        $region41: #{tpu_custom_call.1} parent=39 // pred_check
          %p244 = pneg %p45
        $region42: #{tpu_custom_call.1} parent=39 // pred_check_branch
          %246 = sbr.rel (%p244) target = $region44
        $region43: #{tpu_custom_call.1} parent=39 // pred_region
          %247 = dma.done %s240, 128
        $region44: #{tpu_custom_call.1} parent=39 // pred_fallthru
          _
        // Predicated region
        $region45: #{tpu_custom_call.1} parent=39 // pred_check
          %p248 = pneg %p66
        $region46: #{tpu_custom_call.1} parent=39 // pred_check_branch
          %250 = sbr.rel (%p248) target = $region48
        $region47: #{tpu_custom_call.1} parent=39 // pred_region
          %251 = dma.done [#allocation6], 2560
        $region48: #{tpu_custom_call.1} parent=39 // pred_fallthru
          _
        // Predicated region
        $region49: #{tpu_custom_call.1} parent=39 // pred_check
          %p252 = pneg %p87
        $region50: #{tpu_custom_call.1} parent=39 // pred_check_branch
          %254 = sbr.rel (%p252) target = $region52
        $region51: #{tpu_custom_call.1} parent=39 // pred_region
          %255 = dma.done [#allocation6], 512
        $region52: #{tpu_custom_call.1} parent=39 // pred_fallthru
          _
        // Predicated region
        $region53: #{tpu_custom_call.1} parent=39 // pred_check
          %p256 = pneg %p129
        $region54: #{tpu_custom_call.1} parent=39 // pred_check_branch
          %258 = sbr.rel (%p256) target = $region56
        $region55: #{tpu_custom_call.1} parent=39 // pred_region
          %259 = dma.done [#allocation9], 128
        $region56: #{tpu_custom_call.1} parent=39 // pred_fallthru
          _
        %s260 = sand.u32 %s32, 1
        %s261 = scalar_lea.sflag [#allocation3], %s260
        %s262 = sand.u32 %s32, 1
        %s263 = smul.addr %s262, 8
        %s264 = scalar_lea.vmem [#allocation2], %s263
        %p265 = pneg %p45
        %p266 = pneg %p42
        %p267 = pneg %p66
        %p268 = pneg %p63
        %p269 = pneg %p87
        %p270 = pneg %p84
        %p271 = pneg %p108
        %p272 = pneg %p105
        %p273 = pneg %p129
        %p274 = pneg %p126
        %p275 = pneg %p155
        %p276 = pneg %p152
        %s277 = sand.u32 %s142, 1
        %s278 = scalar_lea.sflag [#allocation4], %s277
        %s279 = sand.u32 %s142, 1
        %s280 = smul.addr %s279, 8
        %s281 = scalar_lea.vmem [#allocation10], %s280
        %v282 = vld [vmem:[%s243] sm:$0xff]
        %v283 = vld [vmem:[#allocation5] sm:$0xff]
        %v284 = vld [vmem:[#allocation5 + $0x8] sm:$0xff]
        %v285 = vld [vmem:[#allocation5 + $0x10] sm:$0xff]
        %v286 = vld [vmem:[#allocation5 + $0x18] sm:$0xff]
        %v287 = vld [vmem:[#allocation5 + $0x20] sm:$0xff]
        %v288 = vld [vmem:[#allocation5 + $0x28] sm:$0xff]
        %v289 = vld [vmem:[#allocation5 + $0x30] sm:$0xff]
        %v290 = vld [vmem:[#allocation5 + $0x38] sm:$0xff]
        %v291 = vld [vmem:[#allocation5 + $0x40] sm:$0xff]
        %v292 = vld [vmem:[#allocation5 + $0x48] sm:$0xff]
        %v293 = vld [vmem:[#allocation5 + $0x50] sm:$0xff]
        %v294 = vld [vmem:[#allocation5 + $0x58] sm:$0xff]
        %v295 = vld [vmem:[#allocation5 + $0x60] sm:$0xff]
        %v296 = vld [vmem:[#allocation5 + $0x68] sm:$0xff]
        %v297 = vld [vmem:[#allocation5 + $0x70] sm:$0xff]
        %v298 = vld [vmem:[#allocation5 + $0x78] sm:$0xff]
        %v299 = vld [vmem:[#allocation5 + $0x80] sm:$0xff]
        %v300 = vld [vmem:[#allocation5 + $0x88] sm:$0xff]
        %v301 = vld [vmem:[#allocation5 + $0x90] sm:$0xff]
        %v302 = vld [vmem:[#allocation5 + $0x98] sm:$0xff]
        %vm303 = vcmask 261120
        %v305 = vsel %vm303, %v282, 0
        %307 = vmatprep.subr.mxu0 %v284
        %308 = vmatpush1.msra.mxu0 %v283
        %309 = vmatprep.subr.mxu0 %v289
        %310 = vmatpush1.msra.mxu0 %v288
        %311 = vmatprep.subr.mxu0 %v294
        %312 = vmatpush1.msra.mxu0 %v293
        %313 = vmatprep.subr.mxu0 %v299
        %314 = vmatpush1.msra.mxu0 %v298
        %315 = vmatprep.subr.mxu0 0.0
        %316 = vmatpush1.msra.mxu0 0.0
        %317 = vmatprep.subr.mxu0 0.0
        %318 = vmatpush1.msra.mxu0 0.0
        %319 = vmatprep.subr.mxu0 0.0
        %320 = vmatpush1.msra.mxu0 0.0
        %321 = vmatprep.subr.mxu0 0.0
        %322 = vmatpush1.msra.mxu0 0.0
        %323 = vmatprep.subr.mxu0 0.0
        %324 = vmatpush1.msra.mxu0 0.0
        %325 = vmatprep.subr.mxu0 0.0
        %326 = vmatpush1.msra.mxu0 0.0
        %327 = vmatprep.subr.mxu0 0.0
        %328 = vmatpush1.msra.mxu0 0.0
        %329 = vmatprep.subr.mxu0 0.0
        %330 = vmatpush1.msra.mxu0 0.0
        %331 = vmatprep.subr.mxu0 0.0
        %332 = vmatpush1.msra.mxu0 0.0
        %333 = vmatprep.subr.mxu0 0.0
        %334 = vmatpush1.msra.mxu0 0.0
        %335 = vmatprep.subr.mxu0 0.0
        %336 = vmatpush1.msra.mxu0 0.0
        %337 = vmatprep.subr.mxu0 0.0
        %338 = vmatpush1.msra.mxu0 0.0
        %339 = vmatprep.subr.mxu0 0.0
        %340 = vmatpush1.msra.mxu0 0.0
        %341 = vmatprep.subr.mxu0 0.0
        %342 = vmatpush1.msra.mxu0 0.0
        %343 = vmatprep.subr.mxu0 0.0
        %344 = vmatpush1.msra.mxu0 0.0
        %345 = vmatprep.subr.mxu0 0.0
        %346 = vmatpush1.msra.mxu0 0.0
        %347 = vmatprep.subr.mxu0 0.0
        %348 = vmatpush1.msra.mxu0 0.0
        %349 = vmatprep.subr.mxu0 0.0
        %350 = vmatpush1.msra.mxu0 0.0
        %351 = vmatprep.subr.mxu0 0.0
        %352 = vmatpush1.msra.mxu0 0.0
        %353 = vmatprep.subr.mxu0 0.0
        %354 = vmatpush1.msra.mxu0 0.0
        %355 = vmatprep.subr.mxu0 0.0
        %356 = vmatpush1.msra.mxu0 0.0
        %357 = vmatprep.subr.mxu0 0.0
        %358 = vmatpush1.msra.mxu0 0.0
        %359 = vmatprep.subr.mxu0 0.0
        %360 = vmatpush1.msra.mxu0 0.0
        %361 = vmatprep.subr.mxu0 0.0
        %362 = vmatpush1.msra.mxu0 0.0
        %363 = vmatprep.subr.mxu0 0.0
        %364 = vmatpush1.msra.mxu0 0.0
        %365 = vmatprep.subr.mxu0 0.0
        %366 = vmatpush1.msra.mxu0 0.0
        %367 = vmatprep.subr.mxu0 0.0
        %368 = vmatpush1.msra.mxu0 0.0
        %369 = vmatprep.subr.mxu0 0.0
        %370 = vmatpush1.msra.mxu0 0.0
        %371 = vmatprep.mubr.f32.mxu0 0.0
        %372 = vmatmul.mubr.f32.gmra.mrb[0].mxu0 %v305
        %v373 = vpop.f32.mrb[0].mxu0
        %v374 = vadd.f32 0.0, %v373
        %v375 = vpop.f32.mrb[0].mxu0
        %v376 = vadd.f32 0.0, %v375
        %377 = vdwg.mxu0
        %378 = vmatprep.subr.mxu0 %v286
        %379 = vmatpush1.msra.mxu0 %v285
        %380 = vmatprep.subr.mxu0 %v291
        %381 = vmatpush1.msra.mxu0 %v290
        %382 = vmatprep.subr.mxu0 %v296
        %383 = vmatpush1.msra.mxu0 %v295
        %384 = vmatprep.subr.mxu0 %v301
        %385 = vmatpush1.msra.mxu0 %v300
        %386 = vmatprep.subr.mxu0 0.0
        %387 = vmatpush1.msra.mxu0 0.0
        %388 = vmatprep.subr.mxu0 0.0
        %389 = vmatpush1.msra.mxu0 0.0
        %390 = vmatprep.subr.mxu0 0.0
        %391 = vmatpush1.msra.mxu0 0.0
        %392 = vmatprep.subr.mxu0 0.0
        %393 = vmatpush1.msra.mxu0 0.0
        %394 = vmatprep.subr.mxu0 0.0
        %395 = vmatpush1.msra.mxu0 0.0
        %396 = vmatprep.subr.mxu0 0.0
        %397 = vmatpush1.msra.mxu0 0.0
        %398 = vmatprep.subr.mxu0 0.0
        %399 = vmatpush1.msra.mxu0 0.0
        %400 = vmatprep.subr.mxu0 0.0
        %401 = vmatpush1.msra.mxu0 0.0
        %402 = vmatprep.subr.mxu0 0.0
        %403 = vmatpush1.msra.mxu0 0.0
        %404 = vmatprep.subr.mxu0 0.0
        %405 = vmatpush1.msra.mxu0 0.0
        %406 = vmatprep.subr.mxu0 0.0
        %407 = vmatpush1.msra.mxu0 0.0
        %408 = vmatprep.subr.mxu0 0.0
        %409 = vmatpush1.msra.mxu0 0.0
        %410 = vmatprep.subr.mxu0 0.0
        %411 = vmatpush1.msra.mxu0 0.0
        %412 = vmatprep.subr.mxu0 0.0
        %413 = vmatpush1.msra.mxu0 0.0
        %414 = vmatprep.subr.mxu0 0.0
        %415 = vmatpush1.msra.mxu0 0.0
        %416 = vmatprep.subr.mxu0 0.0
        %417 = vmatpush1.msra.mxu0 0.0
        %418 = vmatprep.subr.mxu0 0.0
        %419 = vmatpush1.msra.mxu0 0.0
        %420 = vmatprep.subr.mxu0 0.0
        %421 = vmatpush1.msra.mxu0 0.0
        %422 = vmatprep.subr.mxu0 0.0
        %423 = vmatpush1.msra.mxu0 0.0
        %424 = vmatprep.subr.mxu0 0.0
        %425 = vmatpush1.msra.mxu0 0.0
        %426 = vmatprep.subr.mxu0 0.0
        %427 = vmatpush1.msra.mxu0 0.0
        %428 = vmatprep.subr.mxu0 0.0
        %429 = vmatpush1.msra.mxu0 0.0
        %430 = vmatprep.subr.mxu0 0.0
        %431 = vmatpush1.msra.mxu0 0.0
        %432 = vmatprep.subr.mxu0 0.0
        %433 = vmatpush1.msra.mxu0 0.0
        %434 = vmatprep.subr.mxu0 0.0
        %435 = vmatpush1.msra.mxu0 0.0
        %436 = vmatprep.subr.mxu0 0.0
        %437 = vmatpush1.msra.mxu0 0.0
        %438 = vmatprep.subr.mxu0 0.0
        %439 = vmatpush1.msra.mxu0 0.0
        %440 = vmatprep.subr.mxu0 0.0
        %441 = vmatpush1.msra.mxu0 0.0
        %442 = vmatprep.mubr.f32.mxu0 0.0
        %443 = vmatmul.mubr.f32.gmra.mrb[0].mxu0 %v305
        %v444 = vpop.f32.mrb[0].mxu0
        %v445 = vadd.f32 0.0, %v444
        %v446 = vpop.f32.mrb[0].mxu0
        %v447 = vadd.f32 0.0, %v446
        %448 = vdwg.mxu0
        %449 = vmatprep.subr.mxu0 0.0
        %450 = vmatpush1.msra.mxu0 %v287
        %451 = vmatprep.subr.mxu0 0.0
        %452 = vmatpush1.msra.mxu0 %v292
        %453 = vmatprep.subr.mxu0 0.0
        %454 = vmatpush1.msra.mxu0 %v297
        %455 = vmatprep.subr.mxu0 0.0
        %456 = vmatpush1.msra.mxu0 %v302
        %457 = vmatprep.subr.mxu0 0.0
        %458 = vmatpush1.msra.mxu0 0.0
        %459 = vmatprep.subr.mxu0 0.0
        %460 = vmatpush1.msra.mxu0 0.0
        %461 = vmatprep.subr.mxu0 0.0
        %462 = vmatpush1.msra.mxu0 0.0
        %463 = vmatprep.subr.mxu0 0.0
        %464 = vmatpush1.msra.mxu0 0.0
        %465 = vmatprep.subr.mxu0 0.0
        %466 = vmatpush1.msra.mxu0 0.0
        %467 = vmatprep.subr.mxu0 0.0
        %468 = vmatpush1.msra.mxu0 0.0
        %469 = vmatprep.subr.mxu0 0.0
        %470 = vmatpush1.msra.mxu0 0.0
        %471 = vmatprep.subr.mxu0 0.0
        %472 = vmatpush1.msra.mxu0 0.0
        %473 = vmatprep.subr.mxu0 0.0
        %474 = vmatpush1.msra.mxu0 0.0
        %475 = vmatprep.subr.mxu0 0.0
        %476 = vmatpush1.msra.mxu0 0.0
        %477 = vmatprep.subr.mxu0 0.0
        %478 = vmatpush1.msra.mxu0 0.0
        %479 = vmatprep.subr.mxu0 0.0
        %480 = vmatpush1.msra.mxu0 0.0
        %481 = vmatprep.subr.mxu0 0.0
        %482 = vmatpush1.msra.mxu0 0.0
        %483 = vmatprep.subr.mxu0 0.0
        %484 = vmatpush1.msra.mxu0 0.0
        %485 = vmatprep.subr.mxu0 0.0
        %486 = vmatpush1.msra.mxu0 0.0
        %487 = vmatprep.subr.mxu0 0.0
        %488 = vmatpush1.msra.mxu0 0.0
        %489 = vmatprep.subr.mxu0 0.0
        %490 = vmatpush1.msra.mxu0 0.0
        %491 = vmatprep.subr.mxu0 0.0
        %492 = vmatpush1.msra.mxu0 0.0
        %493 = vmatprep.subr.mxu0 0.0
        %494 = vmatpush1.msra.mxu0 0.0
        %495 = vmatprep.subr.mxu0 0.0
        %496 = vmatpush1.msra.mxu0 0.0
        %497 = vmatprep.subr.mxu0 0.0
        %498 = vmatpush1.msra.mxu0 0.0
        %499 = vmatprep.subr.mxu0 0.0
        %500 = vmatpush1.msra.mxu0 0.0
        %501 = vmatprep.subr.mxu0 0.0
        %502 = vmatpush1.msra.mxu0 0.0
        %503 = vmatprep.subr.mxu0 0.0
        %504 = vmatpush1.msra.mxu0 0.0
        %505 = vmatprep.subr.mxu0 0.0
        %506 = vmatpush1.msra.mxu0 0.0
        %507 = vmatprep.subr.mxu0 0.0
        %508 = vmatpush1.msra.mxu0 0.0
        %509 = vmatprep.subr.mxu0 0.0
        %510 = vmatpush1.msra.mxu0 0.0
        %511 = vmatprep.subr.mxu0 0.0
        %512 = vmatpush1.msra.mxu0 0.0
        %513 = vmatprep.mubr.f32.mxu0 0.0
        %514 = vmatmul.mubr.f32.gmra.mrb[0].mxu0 %v305
        %v515 = vpop.f32.mrb[0].mxu0
        %v516 = vadd.f32 0.0, %v515
        %v517 = vpop.f32.mrb[0].mxu0
        %518 = vdwg.mxu0
        %v519 = vld [vmem:[%s3] sm:$0xff]
        %521 = vrot.lane.b32.xlu0 %v519, 8
        %v522 = vpop.permute.xlu0 %521
        %524 = vrot.lane.b32.xlu0 %v519, 16
        %v525 = vpop.permute.xlu0 %524
        %527 = vrot.lane.b32.xlu0 %v519, 24
        %v528 = vpop.permute.xlu0 %527
        %vm530 = vcmask 64512
        %v531 = vsel %vm530, %v519, %v522
        %vm532 = vcmask 130048
        %v533 = vsel %vm532, %v531, %v525
        %vm534 = vcmask 195584
        %v535 = vsel %vm534, %v533, %v528
        %v536 = vld [vmem:[#allocation8] sm:$0xff]
        %538 = vrot.lane.b32.xlu0 %v536, 8
        %v539 = vpop.permute.xlu0 %538
        %541 = vrot.lane.b32.xlu0 %v536, 16
        %v542 = vpop.permute.xlu0 %541
        %544 = vrot.lane.b32.xlu0 %v536, 24
        %v545 = vpop.permute.xlu0 %544
        %v547 = vsel %vm530, %v536, %v539
        %v548 = vsel %vm532, %v547, %v542
        %v549 = vsel %vm534, %v548, %v545
        %v550 = vmul.f32 %v374, %v535
        %v551 = vmul.f32 %v447, %v549
        %v552 = vadd.f32 %v550, %v551
        %v553 = vmul.f32 %v376, %v535
        %v554 = vmul.f32 %v516, %v549
        %v555 = vadd.f32 %v553, %v554
        %557 = vrot.lane.b32.xlu0 %v552, 120
        %v558 = vpop.permute.xlu0 %557
        %560 = vrot.lane.b32.xlu0 %v552, 112
        %v561 = vpop.permute.xlu0 %560
        %563 = vrot.lane.b32.xlu0 %v552, 104
        %v564 = vpop.permute.xlu0 %563
        %v566 = vcombine.low %v552, %v561
        %v567 = vcombine.high %v552, %v561
        %v569 = vunpack.c.l.s4 1983009808
        %v570 = vunpack.c.0.s8 %v569
        %v571 = vlaneseq
        %v572 = vshrl.u32 %v571, 7
        %v573 = vsub.s32 %v570, %v572
        %v574 = vrot.slane %v566, %v573
        %v576 = vunpack.c.l.s4 1983009808
        %v577 = vunpack.c.0.s8 %v576
        %v578 = vlaneseq
        %v579 = vshrl.u32 %v578, 7
        %v580 = vsub.s32 %v577, %v579
        %v581 = vrot.slane %v567, %v580
        %v582 = vcombine.low %v558, %v564
        %v583 = vcombine.high %v558, %v564
        %v585 = vunpack.c.l.s4 1983009808
        %v586 = vunpack.c.0.s8 %v585
        %v587 = vlaneseq
        %v588 = vshrl.u32 %v587, 7
        %v589 = vsub.s32 %v586, %v588
        %v590 = vrot.slane %v582, %v589
        %v592 = vunpack.c.l.s4 1983009808
        %v593 = vunpack.c.0.s8 %v592
        %v594 = vlaneseq
        %v595 = vshrl.u32 %v594, 7
        %v596 = vsub.s32 %v593, %v595
        %v597 = vrot.slane %v583, %v596
        %v598 = vcombine.low %v574, %v590
        %v599 = vcombine.high %v574, %v590
        %v601 = vunpack.c.l.s4 1934713408
        %v602 = vunpack.c.0.s8 %v601
        %v603 = vlaneseq
        %v604 = vshrl.u32 %v603, 7
        %v605 = vsub.s32 %v602, %v604
        %v606 = vrot.slane %v598, %v605
        %v608 = vunpack.c.l.s4 1934713408
        %v609 = vunpack.c.0.s8 %v608
        %v610 = vlaneseq
        %v611 = vshrl.u32 %v610, 7
        %v612 = vsub.s32 %v609, %v611
        %v613 = vrot.slane %v599, %v612
        %v614 = vcombine.low %v581, %v597
        %v615 = vcombine.high %v581, %v597
        %v617 = vunpack.c.l.s4 1934713408
        %v618 = vunpack.c.0.s8 %v617
        %v619 = vlaneseq
        %v620 = vshrl.u32 %v619, 7
        %v621 = vsub.s32 %v618, %v620
        %v622 = vrot.slane %v614, %v621
        %v624 = vunpack.c.l.s4 1934713408
        %v625 = vunpack.c.0.s8 %v624
        %v626 = vlaneseq
        %v627 = vshrl.u32 %v626, 7
        %v628 = vsub.s32 %v625, %v627
        %v629 = vrot.slane %v615, %v628
        %v630 = vcombine.high %v606, 0.0
        %v631 = vcombine.high %v613, 0.0
        %v632 = vcombine.high %v622, 0.0
        %v633 = vcombine.high %v629, 0.0
        %v634 = vcombine.low %v606, %v613
        %v636 = vunpack.c.l.s4 1983009808
        %v637 = vunpack.c.0.s8 %v636
        %v638 = vlaneseq
        %v639 = vshrl.u32 %v638, 7
        %v640 = vsub.s32 %v637, %v639
        %v641 = vrot.slane %v634, %v640
        %v642 = vcombine.low %v630, %v631
        %v644 = vunpack.c.l.s4 1983009808
        %v645 = vunpack.c.0.s8 %v644
        %v646 = vlaneseq
        %v647 = vshrl.u32 %v646, 7
        %v648 = vsub.s32 %v645, %v647
        %v649 = vrot.slane %v642, %v648
        %v650 = vcombine.low %v622, %v629
        %v652 = vunpack.c.l.s4 1983009808
        %v653 = vunpack.c.0.s8 %v652
        %v654 = vlaneseq
        %v655 = vshrl.u32 %v654, 7
        %v656 = vsub.s32 %v653, %v655
        %v657 = vrot.slane %v650, %v656
        %v658 = vcombine.low %v632, %v633
        %v660 = vunpack.c.l.s4 1983009808
        %v661 = vunpack.c.0.s8 %v660
        %v662 = vlaneseq
        %v663 = vshrl.u32 %v662, 7
        %v664 = vsub.s32 %v661, %v663
        %v665 = vrot.slane %v658, %v664
        %v666 = vcombine.low %v641, %v649
        %v667 = vcombine.high %v641, %v649
        %v669 = vunpack.c.l.s4 1934713408
        %v670 = vunpack.c.0.s8 %v669
        %v671 = vlaneseq
        %v672 = vshrl.u32 %v671, 7
        %v673 = vsub.s32 %v670, %v672
        %v674 = vrot.slane %v666, %v673
        %v676 = vunpack.c.l.s4 1934713408
        %v677 = vunpack.c.0.s8 %v676
        %v678 = vlaneseq
        %v679 = vshrl.u32 %v678, 7
        %v680 = vsub.s32 %v677, %v679
        %v681 = vrot.slane %v667, %v680
        %v682 = vcombine.low %v657, %v665
        %v683 = vcombine.high %v657, %v665
        %v685 = vunpack.c.l.s4 1934713408
        %v686 = vunpack.c.0.s8 %v685
        %v687 = vlaneseq
        %v688 = vshrl.u32 %v687, 7
        %v689 = vsub.s32 %v686, %v688
        %v690 = vrot.slane %v682, %v689
        %v692 = vunpack.c.l.s4 1934713408
        %v693 = vunpack.c.0.s8 %v692
        %v694 = vlaneseq
        %v695 = vshrl.u32 %v694, 7
        %v696 = vsub.s32 %v693, %v695
        %v697 = vrot.slane %v683, %v696
        %v698 = vcombine.low %v674, %v690
        %v699 = vcombine.high %v674, %v690
        %v700 = vcombine.low %v681, %v697
        %v701 = vcombine.high %v681, %v697
        %703 = vrot.lane.b32.xlu0 %v555, 120
        %v704 = vpop.permute.xlu0 %703
        %706 = vrot.lane.b32.xlu0 %v555, 112
        %v707 = vpop.permute.xlu0 %706
        %709 = vrot.lane.b32.xlu0 %v555, 104
        %v710 = vpop.permute.xlu0 %709
        %v712 = vcombine.low %v555, %v707
        %v713 = vcombine.high %v555, %v707
        %v715 = vunpack.c.l.s4 1983009808
        %v716 = vunpack.c.0.s8 %v715
        %v717 = vlaneseq
        %v718 = vshrl.u32 %v717, 7
        %v719 = vsub.s32 %v716, %v718
        %v720 = vrot.slane %v712, %v719
        %v722 = vunpack.c.l.s4 1983009808
        %v723 = vunpack.c.0.s8 %v722
        %v724 = vlaneseq
        %v725 = vshrl.u32 %v724, 7
        %v726 = vsub.s32 %v723, %v725
        %v727 = vrot.slane %v713, %v726
        %v728 = vcombine.low %v704, %v710
        %v729 = vcombine.high %v704, %v710
        %v731 = vunpack.c.l.s4 1983009808
        %v732 = vunpack.c.0.s8 %v731
        %v733 = vlaneseq
        %v734 = vshrl.u32 %v733, 7
        %v735 = vsub.s32 %v732, %v734
        %v736 = vrot.slane %v728, %v735
        %v738 = vunpack.c.l.s4 1983009808
        %v739 = vunpack.c.0.s8 %v738
        %v740 = vlaneseq
        %v741 = vshrl.u32 %v740, 7
        %v742 = vsub.s32 %v739, %v741
        %v743 = vrot.slane %v729, %v742
        %v744 = vcombine.low %v720, %v736
        %v745 = vcombine.high %v720, %v736
        %v747 = vunpack.c.l.s4 1934713408
        %v748 = vunpack.c.0.s8 %v747
        %v749 = vlaneseq
        %v750 = vshrl.u32 %v749, 7
        %v751 = vsub.s32 %v748, %v750
        %v752 = vrot.slane %v744, %v751
        %v754 = vunpack.c.l.s4 1934713408
        %v755 = vunpack.c.0.s8 %v754
        %v756 = vlaneseq
        %v757 = vshrl.u32 %v756, 7
        %v758 = vsub.s32 %v755, %v757
        %v759 = vrot.slane %v745, %v758
        %v760 = vcombine.low %v727, %v743
        %v761 = vcombine.high %v727, %v743
        %v763 = vunpack.c.l.s4 1934713408
        %v764 = vunpack.c.0.s8 %v763
        %v765 = vlaneseq
        %v766 = vshrl.u32 %v765, 7
        %v767 = vsub.s32 %v764, %v766
        %v768 = vrot.slane %v760, %v767
        %v770 = vunpack.c.l.s4 1934713408
        %v771 = vunpack.c.0.s8 %v770
        %v772 = vlaneseq
        %v773 = vshrl.u32 %v772, 7
        %v774 = vsub.s32 %v771, %v773
        %v775 = vrot.slane %v761, %v774
        %v776 = vcombine.high %v752, 0.0
        %v777 = vcombine.high %v759, 0.0
        %v778 = vcombine.high %v768, 0.0
        %v779 = vcombine.high %v775, 0.0
        %v780 = vcombine.low %v752, %v759
        %v782 = vunpack.c.l.s4 1983009808
        %v783 = vunpack.c.0.s8 %v782
        %v784 = vlaneseq
        %v785 = vshrl.u32 %v784, 7
        %v786 = vsub.s32 %v783, %v785
        %v787 = vrot.slane %v780, %v786
        %v788 = vcombine.low %v776, %v777
        %v790 = vunpack.c.l.s4 1983009808
        %v791 = vunpack.c.0.s8 %v790
        %v792 = vlaneseq
        %v793 = vshrl.u32 %v792, 7
        %v794 = vsub.s32 %v791, %v793
        %v795 = vrot.slane %v788, %v794
        %v796 = vcombine.low %v768, %v775
        %v798 = vunpack.c.l.s4 1983009808
        %v799 = vunpack.c.0.s8 %v798
        %v800 = vlaneseq
        %v801 = vshrl.u32 %v800, 7
        %v802 = vsub.s32 %v799, %v801
        %v803 = vrot.slane %v796, %v802
        %v804 = vcombine.low %v778, %v779
        %v806 = vunpack.c.l.s4 1983009808
        %v807 = vunpack.c.0.s8 %v806
        %v808 = vlaneseq
        %v809 = vshrl.u32 %v808, 7
        %v810 = vsub.s32 %v807, %v809
        %v811 = vrot.slane %v804, %v810
        %v812 = vcombine.low %v787, %v795
        %v813 = vcombine.high %v787, %v795
        %v815 = vunpack.c.l.s4 1934713408
        %v816 = vunpack.c.0.s8 %v815
        %v817 = vlaneseq
        %v818 = vshrl.u32 %v817, 7
        %v819 = vsub.s32 %v816, %v818
        %v820 = vrot.slane %v812, %v819
        %v822 = vunpack.c.l.s4 1934713408
        %v823 = vunpack.c.0.s8 %v822
        %v824 = vlaneseq
        %v825 = vshrl.u32 %v824, 7
        %v826 = vsub.s32 %v823, %v825
        %v827 = vrot.slane %v813, %v826
        %v828 = vcombine.low %v803, %v811
        %v829 = vcombine.high %v803, %v811
        %v831 = vunpack.c.l.s4 1934713408
        %v832 = vunpack.c.0.s8 %v831
        %v833 = vlaneseq
        %v834 = vshrl.u32 %v833, 7
        %v835 = vsub.s32 %v832, %v834
        %v836 = vrot.slane %v828, %v835
        %v838 = vunpack.c.l.s4 1934713408
        %v839 = vunpack.c.0.s8 %v838
        %v840 = vlaneseq
        %v841 = vshrl.u32 %v840, 7
        %v842 = vsub.s32 %v839, %v841
        %v843 = vrot.slane %v829, %v842
        %v844 = vcombine.low %v820, %v836
        %v845 = vcombine.high %v820, %v836
        %v846 = vcombine.low %v827, %v843
        %v847 = vcombine.high %v827, %v843
        %849 = vrot.lane.b32.xlu0 %v445, 120
        %v850 = vpop.permute.xlu0 %849
        %852 = vrot.lane.b32.xlu0 %v445, 112
        %v853 = vpop.permute.xlu0 %852
        %855 = vrot.lane.b32.xlu0 %v445, 104
        %v856 = vpop.permute.xlu0 %855
        %v858 = vcombine.low %v445, %v853
        %v859 = vcombine.high %v445, %v853
        %v861 = vunpack.c.l.s4 1983009808
        %v862 = vunpack.c.0.s8 %v861
        %v863 = vlaneseq
        %v864 = vshrl.u32 %v863, 7
        %v865 = vsub.s32 %v862, %v864
        %v866 = vrot.slane %v858, %v865
        %v868 = vunpack.c.l.s4 1983009808
        %v869 = vunpack.c.0.s8 %v868
        %v870 = vlaneseq
        %v871 = vshrl.u32 %v870, 7
        %v872 = vsub.s32 %v869, %v871
        %v873 = vrot.slane %v859, %v872
        %v874 = vcombine.low %v850, %v856
        %v875 = vcombine.high %v850, %v856
        %v877 = vunpack.c.l.s4 1983009808
        %v878 = vunpack.c.0.s8 %v877
        %v879 = vlaneseq
        %v880 = vshrl.u32 %v879, 7
        %v881 = vsub.s32 %v878, %v880
        %v882 = vrot.slane %v874, %v881
        %v884 = vunpack.c.l.s4 1983009808
        %v885 = vunpack.c.0.s8 %v884
        %v886 = vlaneseq
        %v887 = vshrl.u32 %v886, 7
        %v888 = vsub.s32 %v885, %v887
        %v889 = vrot.slane %v875, %v888
        %v890 = vcombine.low %v866, %v882
        %v891 = vcombine.high %v866, %v882
        %v893 = vunpack.c.l.s4 1934713408
        %v894 = vunpack.c.0.s8 %v893
        %v895 = vlaneseq
        %v896 = vshrl.u32 %v895, 7
        %v897 = vsub.s32 %v894, %v896
        %v898 = vrot.slane %v890, %v897
        %v900 = vunpack.c.l.s4 1934713408
        %v901 = vunpack.c.0.s8 %v900
        %v902 = vlaneseq
        %v903 = vshrl.u32 %v902, 7
        %v904 = vsub.s32 %v901, %v903
        %v905 = vrot.slane %v891, %v904
        %v906 = vcombine.low %v873, %v889
        %v907 = vcombine.high %v873, %v889
        %v909 = vunpack.c.l.s4 1934713408
        %v910 = vunpack.c.0.s8 %v909
        %v911 = vlaneseq
        %v912 = vshrl.u32 %v911, 7
        %v913 = vsub.s32 %v910, %v912
        %v914 = vrot.slane %v906, %v913
        %v916 = vunpack.c.l.s4 1934713408
        %v917 = vunpack.c.0.s8 %v916
        %v918 = vlaneseq
        %v919 = vshrl.u32 %v918, 7
        %v920 = vsub.s32 %v917, %v919
        %v921 = vrot.slane %v907, %v920
        %v922 = vcombine.high %v898, 0.0
        %v923 = vcombine.high %v905, 0.0
        %v924 = vcombine.high %v914, 0.0
        %v925 = vcombine.high %v921, 0.0
        %v926 = vcombine.low %v898, %v905
        %v928 = vunpack.c.l.s4 1983009808
        %v929 = vunpack.c.0.s8 %v928
        %v930 = vlaneseq
        %v931 = vshrl.u32 %v930, 7
        %v932 = vsub.s32 %v929, %v931
        %v933 = vrot.slane %v926, %v932
        %v934 = vcombine.low %v922, %v923
        %v936 = vunpack.c.l.s4 1983009808
        %v937 = vunpack.c.0.s8 %v936
        %v938 = vlaneseq
        %v939 = vshrl.u32 %v938, 7
        %v940 = vsub.s32 %v937, %v939
        %v941 = vrot.slane %v934, %v940
        %v942 = vcombine.low %v914, %v921
        %v944 = vunpack.c.l.s4 1983009808
        %v945 = vunpack.c.0.s8 %v944
        %v946 = vlaneseq
        %v947 = vshrl.u32 %v946, 7
        %v948 = vsub.s32 %v945, %v947
        %v949 = vrot.slane %v942, %v948
        %v950 = vcombine.low %v924, %v925
        %v952 = vunpack.c.l.s4 1983009808
        %v953 = vunpack.c.0.s8 %v952
        %v954 = vlaneseq
        %v955 = vshrl.u32 %v954, 7
        %v956 = vsub.s32 %v953, %v955
        %v957 = vrot.slane %v950, %v956
        %v958 = vcombine.low %v933, %v941
        %v959 = vcombine.high %v933, %v941
        %v961 = vunpack.c.l.s4 1934713408
        %v962 = vunpack.c.0.s8 %v961
        %v963 = vlaneseq
        %v964 = vshrl.u32 %v963, 7
        %v965 = vsub.s32 %v962, %v964
        %v966 = vrot.slane %v958, %v965
        %v968 = vunpack.c.l.s4 1934713408
        %v969 = vunpack.c.0.s8 %v968
        %v970 = vlaneseq
        %v971 = vshrl.u32 %v970, 7
        %v972 = vsub.s32 %v969, %v971
        %v973 = vrot.slane %v959, %v972
        %v974 = vcombine.low %v949, %v957
        %v975 = vcombine.high %v949, %v957
        %v977 = vunpack.c.l.s4 1934713408
        %v978 = vunpack.c.0.s8 %v977
        %v979 = vlaneseq
        %v980 = vshrl.u32 %v979, 7
        %v981 = vsub.s32 %v978, %v980
        %v982 = vrot.slane %v974, %v981
        %v984 = vunpack.c.l.s4 1934713408
        %v985 = vunpack.c.0.s8 %v984
        %v986 = vlaneseq
        %v987 = vshrl.u32 %v986, 7
        %v988 = vsub.s32 %v985, %v987
        %v989 = vrot.slane %v975, %v988
        %v990 = vcombine.low %v966, %v982
        %v991 = vcombine.high %v966, %v982
        %v992 = vcombine.low %v973, %v989
        %v993 = vcombine.high %v973, %v989
        %v994 = vlaneseq
        %v995 = vshrl.u32 %v994, 7
        %v996 = vlaneseq
        %v997 = vand.u32 %v996, 127
        %vm998 = vcmp.le.s32.totalorder %v997, %v995
        %v999 = vsel %vm998, 0.0, -1e+09
        %v1001 = vsel %vm530, %v698, 0
        %v1004 = vsel %vm530, %v844, 0
        %1006 = vmatprep.subr.mxu0 0.0
        %1007 = vmatpush1.xpose.msra.mxu0 %v1004
        %1008 = vmatprep.subr.mxu0 0.0
        %1009 = vmatpush1.xpose.msra.mxu0 0.0
        %1010 = vmatprep.subr.mxu0 0.0
        %1011 = vmatpush1.xpose.msra.mxu0 0.0
        %1012 = vmatprep.subr.mxu0 0.0
        %1013 = vmatpush1.xpose.msra.mxu0 0.0
        %1014 = vmatprep.subr.mxu0 0.0
        %1015 = vmatpush1.xpose.msra.mxu0 0.0
        %1016 = vmatprep.subr.mxu0 0.0
        %1017 = vmatpush1.xpose.msra.mxu0 0.0
        %1018 = vmatprep.subr.mxu0 0.0
        %1019 = vmatpush1.xpose.msra.mxu0 0.0
        %1020 = vmatprep.subr.mxu0 0.0
        %1021 = vmatpush1.xpose.msra.mxu0 0.0
        %1022 = vmatprep.subr.mxu0 0.0
        %1023 = vmatpush1.xpose.msra.mxu0 0.0
        %1024 = vmatprep.subr.mxu0 0.0
        %1025 = vmatpush1.xpose.msra.mxu0 0.0
        %1026 = vmatprep.subr.mxu0 0.0
        %1027 = vmatpush1.xpose.msra.mxu0 0.0
        %1028 = vmatprep.subr.mxu0 0.0
        %1029 = vmatpush1.xpose.msra.mxu0 0.0
        %1030 = vmatprep.subr.mxu0 0.0
        %1031 = vmatpush1.xpose.msra.mxu0 0.0
        %1032 = vmatprep.subr.mxu0 0.0
        %1033 = vmatpush1.xpose.msra.mxu0 0.0
        %1034 = vmatprep.subr.mxu0 0.0
        %1035 = vmatpush1.xpose.msra.mxu0 0.0
        %1036 = vmatprep.subr.mxu0 0.0
        %1037 = vmatpush1.xpose.msra.mxu0 0.0
        %1038 = vmatprep.subr.mxu0 0.0
        %1039 = vmatpush1.xpose.msra.mxu0 0.0
        %1040 = vmatprep.subr.mxu0 0.0
        %1041 = vmatpush1.xpose.msra.mxu0 0.0
        %1042 = vmatprep.subr.mxu0 0.0
        %1043 = vmatpush1.xpose.msra.mxu0 0.0
        %1044 = vmatprep.subr.mxu0 0.0
        %1045 = vmatpush1.xpose.msra.mxu0 0.0
        %1046 = vmatprep.subr.mxu0 0.0
        %1047 = vmatpush1.xpose.msra.mxu0 0.0
        %1048 = vmatprep.subr.mxu0 0.0
        %1049 = vmatpush1.xpose.msra.mxu0 0.0
        %1050 = vmatprep.subr.mxu0 0.0
        %1051 = vmatpush1.xpose.msra.mxu0 0.0
        %1052 = vmatprep.subr.mxu0 0.0
        %1053 = vmatpush1.xpose.msra.mxu0 0.0
        %1054 = vmatprep.subr.mxu0 0.0
        %1055 = vmatpush1.xpose.msra.mxu0 0.0
        %1056 = vmatprep.subr.mxu0 0.0
        %1057 = vmatpush1.xpose.msra.mxu0 0.0
        %1058 = vmatprep.subr.mxu0 0.0
        %1059 = vmatpush1.xpose.msra.mxu0 0.0
        %1060 = vmatprep.subr.mxu0 0.0
        %1061 = vmatpush1.xpose.msra.mxu0 0.0
        %1062 = vmatprep.subr.mxu0 0.0
        %1063 = vmatpush1.xpose.msra.mxu0 0.0
        %1064 = vmatprep.subr.mxu0 0.0
        %1065 = vmatpush1.xpose.msra.mxu0 0.0
        %1066 = vmatprep.subr.mxu0 0.0
        %1067 = vmatpush1.xpose.msra.mxu0 0.0
        %1068 = vmatprep.subr.mxu0 0.0
        %1069 = vmatpush1.xpose.msra.mxu0 0.0
        %1070 = vmatprep.mubr.f32.mxu0 0.0
        %1071 = vmatmul.mubr.f32.gmra.mrb[0].mxu0 %v1001
        %v1072 = vpop.f32.mrb[0].mxu0
        %v1073 = vadd.f32 %v999, %v1072
        %v1074 = vpop.f32.mrb[0].mxu0
        %1075 = vdwg.mxu0
        %v1077 = vsel %vm530, %v699, 0
        %v1080 = vsel %vm530, %v845, 0
        %1082 = vmatprep.subr.mxu0 0.0
        %1083 = vmatpush1.xpose.msra.mxu0 %v1080
        %1084 = vmatprep.subr.mxu0 0.0
        %1085 = vmatpush1.xpose.msra.mxu0 0.0
        %1086 = vmatprep.subr.mxu0 0.0
        %1087 = vmatpush1.xpose.msra.mxu0 0.0
        %1088 = vmatprep.subr.mxu0 0.0
        %1089 = vmatpush1.xpose.msra.mxu0 0.0
        %1090 = vmatprep.subr.mxu0 0.0
        %1091 = vmatpush1.xpose.msra.mxu0 0.0
        %1092 = vmatprep.subr.mxu0 0.0
        %1093 = vmatpush1.xpose.msra.mxu0 0.0
        %1094 = vmatprep.subr.mxu0 0.0
        %1095 = vmatpush1.xpose.msra.mxu0 0.0
        %1096 = vmatprep.subr.mxu0 0.0
        %1097 = vmatpush1.xpose.msra.mxu0 0.0
        %1098 = vmatprep.subr.mxu0 0.0
        %1099 = vmatpush1.xpose.msra.mxu0 0.0
        %1100 = vmatprep.subr.mxu0 0.0
        %1101 = vmatpush1.xpose.msra.mxu0 0.0
        %1102 = vmatprep.subr.mxu0 0.0
        %1103 = vmatpush1.xpose.msra.mxu0 0.0
        %1104 = vmatprep.subr.mxu0 0.0
        %1105 = vmatpush1.xpose.msra.mxu0 0.0
        %1106 = vmatprep.subr.mxu0 0.0
        %1107 = vmatpush1.xpose.msra.mxu0 0.0
        %1108 = vmatprep.subr.mxu0 0.0
        %1109 = vmatpush1.xpose.msra.mxu0 0.0
        %1110 = vmatprep.subr.mxu0 0.0
        %1111 = vmatpush1.xpose.msra.mxu0 0.0
        %1112 = vmatprep.subr.mxu0 0.0
        %1113 = vmatpush1.xpose.msra.mxu0 0.0
        %1114 = vmatprep.subr.mxu0 0.0
        %1115 = vmatpush1.xpose.msra.mxu0 0.0
        %1116 = vmatprep.subr.mxu0 0.0
        %1117 = vmatpush1.xpose.msra.mxu0 0.0
        %1118 = vmatprep.subr.mxu0 0.0
        %1119 = vmatpush1.xpose.msra.mxu0 0.0
        %1120 = vmatprep.subr.mxu0 0.0
        %1121 = vmatpush1.xpose.msra.mxu0 0.0
        %1122 = vmatprep.subr.mxu0 0.0
        %1123 = vmatpush1.xpose.msra.mxu0 0.0
        %1124 = vmatprep.subr.mxu0 0.0
        %1125 = vmatpush1.xpose.msra.mxu0 0.0
        %1126 = vmatprep.subr.mxu0 0.0
        %1127 = vmatpush1.xpose.msra.mxu0 0.0
        %1128 = vmatprep.subr.mxu0 0.0
        %1129 = vmatpush1.xpose.msra.mxu0 0.0
        %1130 = vmatprep.subr.mxu0 0.0
        %1131 = vmatpush1.xpose.msra.mxu0 0.0
        %1132 = vmatprep.subr.mxu0 0.0
        %1133 = vmatpush1.xpose.msra.mxu0 0.0
        %1134 = vmatprep.subr.mxu0 0.0
        %1135 = vmatpush1.xpose.msra.mxu0 0.0
        %1136 = vmatprep.subr.mxu0 0.0
        %1137 = vmatpush1.xpose.msra.mxu0 0.0
        %1138 = vmatprep.subr.mxu0 0.0
        %1139 = vmatpush1.xpose.msra.mxu0 0.0
        %1140 = vmatprep.subr.mxu0 0.0
        %1141 = vmatpush1.xpose.msra.mxu0 0.0
        %1142 = vmatprep.subr.mxu0 0.0
        %1143 = vmatpush1.xpose.msra.mxu0 0.0
        %1144 = vmatprep.subr.mxu0 0.0
        %1145 = vmatpush1.xpose.msra.mxu0 0.0
        %1146 = vmatprep.mubr.f32.mxu0 0.0
        %1147 = vmatmul.mubr.f32.gmra.mrb[0].mxu0 %v1077
        %v1148 = vpop.f32.mrb[0].mxu0
        %v1149 = vadd.f32 %v999, %v1148
        %v1150 = vpop.f32.mrb[0].mxu0
        %1151 = vdwg.mxu0
        %v1153 = vsel %vm530, %v700, 0
        %v1156 = vsel %vm530, %v846, 0
        %1158 = vmatprep.subr.mxu0 0.0
        %1159 = vmatpush1.xpose.msra.mxu0 %v1156
        %1160 = vmatprep.subr.mxu0 0.0
        %1161 = vmatpush1.xpose.msra.mxu0 0.0
        %1162 = vmatprep.subr.mxu0 0.0
        %1163 = vmatpush1.xpose.msra.mxu0 0.0
        %1164 = vmatprep.subr.mxu0 0.0
        %1165 = vmatpush1.xpose.msra.mxu0 0.0
        %1166 = vmatprep.subr.mxu0 0.0
        %1167 = vmatpush1.xpose.msra.mxu0 0.0
        %1168 = vmatprep.subr.mxu0 0.0
        %1169 = vmatpush1.xpose.msra.mxu0 0.0
        %1170 = vmatprep.subr.mxu0 0.0
        %1171 = vmatpush1.xpose.msra.mxu0 0.0
        %1172 = vmatprep.subr.mxu0 0.0
        %1173 = vmatpush1.xpose.msra.mxu0 0.0
        %1174 = vmatprep.subr.mxu0 0.0
        %1175 = vmatpush1.xpose.msra.mxu0 0.0
        %1176 = vmatprep.subr.mxu0 0.0
        %1177 = vmatpush1.xpose.msra.mxu0 0.0
        %1178 = vmatprep.subr.mxu0 0.0
        %1179 = vmatpush1.xpose.msra.mxu0 0.0
        %1180 = vmatprep.subr.mxu0 0.0
        %1181 = vmatpush1.xpose.msra.mxu0 0.0
        %1182 = vmatprep.subr.mxu0 0.0
        %1183 = vmatpush1.xpose.msra.mxu0 0.0
        %1184 = vmatprep.subr.mxu0 0.0
        %1185 = vmatpush1.xpose.msra.mxu0 0.0
        %1186 = vmatprep.subr.mxu0 0.0
        %1187 = vmatpush1.xpose.msra.mxu0 0.0
        %1188 = vmatprep.subr.mxu0 0.0
        %1189 = vmatpush1.xpose.msra.mxu0 0.0
        %1190 = vmatprep.subr.mxu0 0.0
        %1191 = vmatpush1.xpose.msra.mxu0 0.0
        %1192 = vmatprep.subr.mxu0 0.0
        %1193 = vmatpush1.xpose.msra.mxu0 0.0
        %1194 = vmatprep.subr.mxu0 0.0
        %1195 = vmatpush1.xpose.msra.mxu0 0.0
        %1196 = vmatprep.subr.mxu0 0.0
        %1197 = vmatpush1.xpose.msra.mxu0 0.0
        %1198 = vmatprep.subr.mxu0 0.0
        %1199 = vmatpush1.xpose.msra.mxu0 0.0
        %1200 = vmatprep.subr.mxu0 0.0
        %1201 = vmatpush1.xpose.msra.mxu0 0.0
        %1202 = vmatprep.subr.mxu0 0.0
        %1203 = vmatpush1.xpose.msra.mxu0 0.0
        %1204 = vmatprep.subr.mxu0 0.0
        %1205 = vmatpush1.xpose.msra.mxu0 0.0
        %1206 = vmatprep.subr.mxu0 0.0
        %1207 = vmatpush1.xpose.msra.mxu0 0.0
        %1208 = vmatprep.subr.mxu0 0.0
        %1209 = vmatpush1.xpose.msra.mxu0 0.0
        %1210 = vmatprep.subr.mxu0 0.0
        %1211 = vmatpush1.xpose.msra.mxu0 0.0
        %1212 = vmatprep.subr.mxu0 0.0
        %1213 = vmatpush1.xpose.msra.mxu0 0.0
        %1214 = vmatprep.subr.mxu0 0.0
        %1215 = vmatpush1.xpose.msra.mxu0 0.0
        %1216 = vmatprep.subr.mxu0 0.0
        %1217 = vmatpush1.xpose.msra.mxu0 0.0
        %1218 = vmatprep.subr.mxu0 0.0
        %1219 = vmatpush1.xpose.msra.mxu0 0.0
        %1220 = vmatprep.subr.mxu0 0.0
        %1221 = vmatpush1.xpose.msra.mxu0 0.0
        %1222 = vmatprep.mubr.f32.mxu0 0.0
        %1223 = vmatmul.mubr.f32.gmra.mrb[0].mxu0 %v1153
        %v1224 = vpop.f32.mrb[0].mxu0
        %v1225 = vadd.f32 %v999, %v1224
        %v1226 = vpop.f32.mrb[0].mxu0
        %1227 = vdwg.mxu0
        %v1229 = vsel %vm530, %v701, 0
        %v1232 = vsel %vm530, %v847, 0
        %1234 = vmatprep.subr.mxu0 0.0
        %1235 = vmatpush1.xpose.msra.mxu0 %v1232
        %1236 = vmatprep.subr.mxu0 0.0
        %1237 = vmatpush1.xpose.msra.mxu0 0.0
        %1238 = vmatprep.subr.mxu0 0.0
        %1239 = vmatpush1.xpose.msra.mxu0 0.0
        %1240 = vmatprep.subr.mxu0 0.0
        %1241 = vmatpush1.xpose.msra.mxu0 0.0
        %1242 = vmatprep.subr.mxu0 0.0
        %1243 = vmatpush1.xpose.msra.mxu0 0.0
        %1244 = vmatprep.subr.mxu0 0.0
        %1245 = vmatpush1.xpose.msra.mxu0 0.0
        %1246 = vmatprep.subr.mxu0 0.0
        %1247 = vmatpush1.xpose.msra.mxu0 0.0
        %1248 = vmatprep.subr.mxu0 0.0
        %1249 = vmatpush1.xpose.msra.mxu0 0.0
        %1250 = vmatprep.subr.mxu0 0.0
        %1251 = vmatpush1.xpose.msra.mxu0 0.0
        %1252 = vmatprep.subr.mxu0 0.0
        %1253 = vmatpush1.xpose.msra.mxu0 0.0
        %1254 = vmatprep.subr.mxu0 0.0
        %1255 = vmatpush1.xpose.msra.mxu0 0.0
        %1256 = vmatprep.subr.mxu0 0.0
        %1257 = vmatpush1.xpose.msra.mxu0 0.0
        %1258 = vmatprep.subr.mxu0 0.0
        %1259 = vmatpush1.xpose.msra.mxu0 0.0
        %1260 = vmatprep.subr.mxu0 0.0
        %1261 = vmatpush1.xpose.msra.mxu0 0.0
        %1262 = vmatprep.subr.mxu0 0.0
        %1263 = vmatpush1.xpose.msra.mxu0 0.0
        %1264 = vmatprep.subr.mxu0 0.0
        %1265 = vmatpush1.xpose.msra.mxu0 0.0
        %1266 = vmatprep.subr.mxu0 0.0
        %1267 = vmatpush1.xpose.msra.mxu0 0.0
        %1268 = vmatprep.subr.mxu0 0.0
        %1269 = vmatpush1.xpose.msra.mxu0 0.0
        %1270 = vmatprep.subr.mxu0 0.0
        %1271 = vmatpush1.xpose.msra.mxu0 0.0
        %1272 = vmatprep.subr.mxu0 0.0
        %1273 = vmatpush1.xpose.msra.mxu0 0.0
        %1274 = vmatprep.subr.mxu0 0.0
        %1275 = vmatpush1.xpose.msra.mxu0 0.0
        %1276 = vmatprep.subr.mxu0 0.0
        %1277 = vmatpush1.xpose.msra.mxu0 0.0
        %1278 = vmatprep.subr.mxu0 0.0
        %1279 = vmatpush1.xpose.msra.mxu0 0.0
        %1280 = vmatprep.subr.mxu0 0.0
        %1281 = vmatpush1.xpose.msra.mxu0 0.0
        %1282 = vmatprep.subr.mxu0 0.0
        %1283 = vmatpush1.xpose.msra.mxu0 0.0
        %1284 = vmatprep.subr.mxu0 0.0
        %1285 = vmatpush1.xpose.msra.mxu0 0.0
        %1286 = vmatprep.subr.mxu0 0.0
        %1287 = vmatpush1.xpose.msra.mxu0 0.0
        %1288 = vmatprep.subr.mxu0 0.0
        %1289 = vmatpush1.xpose.msra.mxu0 0.0
        %1290 = vmatprep.subr.mxu0 0.0
        %1291 = vmatpush1.xpose.msra.mxu0 0.0
        %1292 = vmatprep.subr.mxu0 0.0
        %1293 = vmatpush1.xpose.msra.mxu0 0.0
        %1294 = vmatprep.subr.mxu0 0.0
        %1295 = vmatpush1.xpose.msra.mxu0 0.0
        %1296 = vmatprep.subr.mxu0 0.0
        %1297 = vmatpush1.xpose.msra.mxu0 0.0
        %1298 = vmatprep.mubr.f32.mxu0 0.0
        %1299 = vmatmul.mubr.f32.gmra.mrb[0].mxu0 %v1229
        %v1300 = vpop.f32.mrb[0].mxu0
        %v1301 = vadd.f32 %v999, %v1300
        %v1302 = vpop.f32.mrb[0].mxu0
        %1303 = vdwg.mxu0
        %v1304 = vsel %vm530, %v1073, -inf
        %1305 = vmax.xlane.f32.xlu0 %v1304
        %v1306 = vpop.xlane.xlu0 %1305
        %v1307 = vsel %vm530, %v1149, -inf
        %1308 = vmax.xlane.f32.xlu0 %v1307
        %v1309 = vpop.xlane.xlu0 %1308
        %v1310 = vsel %vm530, %v1225, -inf
        %1311 = vmax.xlane.f32.xlu0 %v1310
        %v1312 = vpop.xlane.xlu0 %1311
        %v1313 = vsel %vm530, %v1301, -inf
        %1314 = vmax.xlane.f32.xlu0 %v1313
        %v1315 = vpop.xlane.xlu0 %1314
        %v1316 = vsub.f32 %v1073, %v1306
        %v1317 = vsub.f32 %v1149, %v1309
        %v1318 = vsub.f32 %v1225, %v1312
        %v1319 = vsub.f32 %v1301, %v1315
        %v1320 = vmul.f32 %v1316, 1.442695
        %v1321 = vpow.pop %v1320
        %v1322 = vmul.f32 %v1317, 1.442695
        %v1323 = vpow.pop %v1322
        %v1324 = vmul.f32 %v1318, 1.442695
        %v1325 = vpow.pop %v1324
        %v1326 = vmul.f32 %v1319, 1.442695
        %v1327 = vpow.pop %v1326
        %v1328 = vsel %vm530, %v1321, 0.0
        %1329 = vadd.xlane.f32.xlu0 %v1328
        %v1330 = vpop.xlane.xlu0 %1329
        %v1331 = vsel %vm530, %v1323, 0.0
        %1332 = vadd.xlane.f32.xlu0 %v1331
        %v1333 = vpop.xlane.xlu0 %1332
        %v1334 = vsel %vm530, %v1325, 0.0
        %1335 = vadd.xlane.f32.xlu0 %v1334
        %v1336 = vpop.xlane.xlu0 %1335
        %v1337 = vsel %vm530, %v1327, 0.0
        %1338 = vadd.xlane.f32.xlu0 %v1337
        %v1339 = vpop.xlane.xlu0 %1338
        %v1340 = vrcp.pop %v1330
        %v1341 = vmul.f32 %v1321, %v1340
        %v1342 = vrcp.pop %v1333
        %v1343 = vmul.f32 %v1323, %v1342
        %v1344 = vrcp.pop %v1336
        %v1345 = vmul.f32 %v1325, %v1344
        %v1346 = vrcp.pop %v1339
        %v1347 = vmul.f32 %v1327, %v1346
        %v1349 = vsel %vm530, %v1341, 0
        %1351 = vmatprep.subr.mxu0 0.0
        %1352 = vmatpush1.msra.mxu0 %v990
        %1353 = vmatprep.subr.mxu0 0.0
        %1354 = vmatpush1.msra.mxu0 0.0
        %1355 = vmatprep.subr.mxu0 0.0
        %1356 = vmatpush1.msra.mxu0 0.0
        %1357 = vmatprep.subr.mxu0 0.0
        %1358 = vmatpush1.msra.mxu0 0.0
        %1359 = vmatprep.subr.mxu0 0.0
        %1360 = vmatpush1.msra.mxu0 0.0
        %1361 = vmatprep.subr.mxu0 0.0
        %1362 = vmatpush1.msra.mxu0 0.0
        %1363 = vmatprep.subr.mxu0 0.0
        %1364 = vmatpush1.msra.mxu0 0.0
        %1365 = vmatprep.subr.mxu0 0.0
        %1366 = vmatpush1.msra.mxu0 0.0
        %1367 = vmatprep.subr.mxu0 0.0
        %1368 = vmatpush1.msra.mxu0 0.0
        %1369 = vmatprep.subr.mxu0 0.0
        %1370 = vmatpush1.msra.mxu0 0.0
        %1371 = vmatprep.subr.mxu0 0.0
        %1372 = vmatpush1.msra.mxu0 0.0
        %1373 = vmatprep.subr.mxu0 0.0
        %1374 = vmatpush1.msra.mxu0 0.0
        %1375 = vmatprep.subr.mxu0 0.0
        %1376 = vmatpush1.msra.mxu0 0.0
        %1377 = vmatprep.subr.mxu0 0.0
        %1378 = vmatpush1.msra.mxu0 0.0
        %1379 = vmatprep.subr.mxu0 0.0
        %1380 = vmatpush1.msra.mxu0 0.0
        %1381 = vmatprep.subr.mxu0 0.0
        %1382 = vmatpush1.msra.mxu0 0.0
        %1383 = vmatprep.subr.mxu0 0.0
        %1384 = vmatpush1.msra.mxu0 0.0
        %1385 = vmatprep.subr.mxu0 0.0
        %1386 = vmatpush1.msra.mxu0 0.0
        %1387 = vmatprep.subr.mxu0 0.0
        %1388 = vmatpush1.msra.mxu0 0.0
        %1389 = vmatprep.subr.mxu0 0.0
        %1390 = vmatpush1.msra.mxu0 0.0
        %1391 = vmatprep.subr.mxu0 0.0
        %1392 = vmatpush1.msra.mxu0 0.0
        %1393 = vmatprep.subr.mxu0 0.0
        %1394 = vmatpush1.msra.mxu0 0.0
        %1395 = vmatprep.subr.mxu0 0.0
        %1396 = vmatpush1.msra.mxu0 0.0
        %1397 = vmatprep.subr.mxu0 0.0
        %1398 = vmatpush1.msra.mxu0 0.0
        %1399 = vmatprep.subr.mxu0 0.0
        %1400 = vmatpush1.msra.mxu0 0.0
        %1401 = vmatprep.subr.mxu0 0.0
        %1402 = vmatpush1.msra.mxu0 0.0
        %1403 = vmatprep.subr.mxu0 0.0
        %1404 = vmatpush1.msra.mxu0 0.0
        %1405 = vmatprep.subr.mxu0 0.0
        %1406 = vmatpush1.msra.mxu0 0.0
        %1407 = vmatprep.subr.mxu0 0.0
        %1408 = vmatpush1.msra.mxu0 0.0
        %1409 = vmatprep.subr.mxu0 0.0
        %1410 = vmatpush1.msra.mxu0 0.0
        %1411 = vmatprep.subr.mxu0 0.0
        %1412 = vmatpush1.msra.mxu0 0.0
        %1413 = vmatprep.subr.mxu0 0.0
        %1414 = vmatpush1.msra.mxu0 0.0
        %1415 = vmatprep.mubr.f32.mxu0 0.0
        %1416 = vmatmul.mubr.f32.gmra.mrb[0].mxu0 %v1349
        %v1417 = vpop.f32.mrb[0].mxu0
        %v1418 = vadd.f32 0.0, %v1417
        %v1419 = vpop.f32.mrb[0].mxu0
        %1420 = vdwg.mxu0
        %v1422 = vsel %vm530, %v1343, 0
        %1424 = vmatprep.subr.mxu0 0.0
        %1425 = vmatpush1.msra.mxu0 %v991
        %1426 = vmatprep.subr.mxu0 0.0
        %1427 = vmatpush1.msra.mxu0 0.0
        %1428 = vmatprep.subr.mxu0 0.0
        %1429 = vmatpush1.msra.mxu0 0.0
        %1430 = vmatprep.subr.mxu0 0.0
        %1431 = vmatpush1.msra.mxu0 0.0
        %1432 = vmatprep.subr.mxu0 0.0
        %1433 = vmatpush1.msra.mxu0 0.0
        %1434 = vmatprep.subr.mxu0 0.0
        %1435 = vmatpush1.msra.mxu0 0.0
        %1436 = vmatprep.subr.mxu0 0.0
        %1437 = vmatpush1.msra.mxu0 0.0
        %1438 = vmatprep.subr.mxu0 0.0
        %1439 = vmatpush1.msra.mxu0 0.0
        %1440 = vmatprep.subr.mxu0 0.0
        %1441 = vmatpush1.msra.mxu0 0.0
        %1442 = vmatprep.subr.mxu0 0.0
        %1443 = vmatpush1.msra.mxu0 0.0
        %1444 = vmatprep.subr.mxu0 0.0
        %1445 = vmatpush1.msra.mxu0 0.0
        %1446 = vmatprep.subr.mxu0 0.0
        %1447 = vmatpush1.msra.mxu0 0.0
        %1448 = vmatprep.subr.mxu0 0.0
        %1449 = vmatpush1.msra.mxu0 0.0
        %1450 = vmatprep.subr.mxu0 0.0
        %1451 = vmatpush1.msra.mxu0 0.0
        %1452 = vmatprep.subr.mxu0 0.0
        %1453 = vmatpush1.msra.mxu0 0.0
        %1454 = vmatprep.subr.mxu0 0.0
        %1455 = vmatpush1.msra.mxu0 0.0
        %1456 = vmatprep.subr.mxu0 0.0
        %1457 = vmatpush1.msra.mxu0 0.0
        %1458 = vmatprep.subr.mxu0 0.0
        %1459 = vmatpush1.msra.mxu0 0.0
        %1460 = vmatprep.subr.mxu0 0.0
        %1461 = vmatpush1.msra.mxu0 0.0
        %1462 = vmatprep.subr.mxu0 0.0
        %1463 = vmatpush1.msra.mxu0 0.0
        %1464 = vmatprep.subr.mxu0 0.0
        %1465 = vmatpush1.msra.mxu0 0.0
        %1466 = vmatprep.subr.mxu0 0.0
        %1467 = vmatpush1.msra.mxu0 0.0
        %1468 = vmatprep.subr.mxu0 0.0
        %1469 = vmatpush1.msra.mxu0 0.0
        %1470 = vmatprep.subr.mxu0 0.0
        %1471 = vmatpush1.msra.mxu0 0.0
        %1472 = vmatprep.subr.mxu0 0.0
        %1473 = vmatpush1.msra.mxu0 0.0
        %1474 = vmatprep.subr.mxu0 0.0
        %1475 = vmatpush1.msra.mxu0 0.0
        %1476 = vmatprep.subr.mxu0 0.0
        %1477 = vmatpush1.msra.mxu0 0.0
        %1478 = vmatprep.subr.mxu0 0.0
        %1479 = vmatpush1.msra.mxu0 0.0
        %1480 = vmatprep.subr.mxu0 0.0
        %1481 = vmatpush1.msra.mxu0 0.0
        %1482 = vmatprep.subr.mxu0 0.0
        %1483 = vmatpush1.msra.mxu0 0.0
        %1484 = vmatprep.subr.mxu0 0.0
        %1485 = vmatpush1.msra.mxu0 0.0
        %1486 = vmatprep.subr.mxu0 0.0
        %1487 = vmatpush1.msra.mxu0 0.0
        %1488 = vmatprep.mubr.f32.mxu0 0.0
        %1489 = vmatmul.mubr.f32.gmra.mrb[0].mxu0 %v1422
        %v1490 = vpop.f32.mrb[0].mxu0
        %v1491 = vadd.f32 0.0, %v1490
        %v1492 = vpop.f32.mrb[0].mxu0
        %1493 = vdwg.mxu0
        %v1495 = vsel %vm530, %v1345, 0
        %1497 = vmatprep.subr.mxu0 0.0
        %1498 = vmatpush1.msra.mxu0 %v992
        %1499 = vmatprep.subr.mxu0 0.0
        %1500 = vmatpush1.msra.mxu0 0.0
        %1501 = vmatprep.subr.mxu0 0.0
        %1502 = vmatpush1.msra.mxu0 0.0
        %1503 = vmatprep.subr.mxu0 0.0
        %1504 = vmatpush1.msra.mxu0 0.0
        %1505 = vmatprep.subr.mxu0 0.0
        %1506 = vmatpush1.msra.mxu0 0.0
        %1507 = vmatprep.subr.mxu0 0.0
        %1508 = vmatpush1.msra.mxu0 0.0
        %1509 = vmatprep.subr.mxu0 0.0
        %1510 = vmatpush1.msra.mxu0 0.0
        %1511 = vmatprep.subr.mxu0 0.0
        %1512 = vmatpush1.msra.mxu0 0.0
        %1513 = vmatprep.subr.mxu0 0.0
        %1514 = vmatpush1.msra.mxu0 0.0
        %1515 = vmatprep.subr.mxu0 0.0
        %1516 = vmatpush1.msra.mxu0 0.0
        %1517 = vmatprep.subr.mxu0 0.0
        %1518 = vmatpush1.msra.mxu0 0.0
        %1519 = vmatprep.subr.mxu0 0.0
        %1520 = vmatpush1.msra.mxu0 0.0
        %1521 = vmatprep.subr.mxu0 0.0
        %1522 = vmatpush1.msra.mxu0 0.0
        %1523 = vmatprep.subr.mxu0 0.0
        %1524 = vmatpush1.msra.mxu0 0.0
        %1525 = vmatprep.subr.mxu0 0.0
        %1526 = vmatpush1.msra.mxu0 0.0
        %1527 = vmatprep.subr.mxu0 0.0
        %1528 = vmatpush1.msra.mxu0 0.0
        %1529 = vmatprep.subr.mxu0 0.0
        %1530 = vmatpush1.msra.mxu0 0.0
        %1531 = vmatprep.subr.mxu0 0.0
        %1532 = vmatpush1.msra.mxu0 0.0
        %1533 = vmatprep.subr.mxu0 0.0
        %1534 = vmatpush1.msra.mxu0 0.0
        %1535 = vmatprep.subr.mxu0 0.0
        %1536 = vmatpush1.msra.mxu0 0.0
        %1537 = vmatprep.subr.mxu0 0.0
        %1538 = vmatpush1.msra.mxu0 0.0
        %1539 = vmatprep.subr.mxu0 0.0
        %1540 = vmatpush1.msra.mxu0 0.0
        %1541 = vmatprep.subr.mxu0 0.0
        %1542 = vmatpush1.msra.mxu0 0.0
        %1543 = vmatprep.subr.mxu0 0.0
        %1544 = vmatpush1.msra.mxu0 0.0
        %1545 = vmatprep.subr.mxu0 0.0
        %1546 = vmatpush1.msra.mxu0 0.0
        %1547 = vmatprep.subr.mxu0 0.0
        %1548 = vmatpush1.msra.mxu0 0.0
        %1549 = vmatprep.subr.mxu0 0.0
        %1550 = vmatpush1.msra.mxu0 0.0
        %1551 = vmatprep.subr.mxu0 0.0
        %1552 = vmatpush1.msra.mxu0 0.0
        %1553 = vmatprep.subr.mxu0 0.0
        %1554 = vmatpush1.msra.mxu0 0.0
        %1555 = vmatprep.subr.mxu0 0.0
        %1556 = vmatpush1.msra.mxu0 0.0
        %1557 = vmatprep.subr.mxu0 0.0
        %1558 = vmatpush1.msra.mxu0 0.0
        %1559 = vmatprep.subr.mxu0 0.0
        %1560 = vmatpush1.msra.mxu0 0.0
        %1561 = vmatprep.mubr.f32.mxu0 0.0
        %1562 = vmatmul.mubr.f32.gmra.mrb[0].mxu0 %v1495
        %v1563 = vpop.f32.mrb[0].mxu0
        %v1564 = vadd.f32 0.0, %v1563
        %v1565 = vpop.f32.mrb[0].mxu0
        %1566 = vdwg.mxu0
        %v1568 = vsel %vm530, %v1347, 0
        %1570 = vmatprep.subr.mxu0 0.0
        %1571 = vmatpush1.msra.mxu0 %v993
        %1572 = vmatprep.subr.mxu0 0.0
        %1573 = vmatpush1.msra.mxu0 0.0
        %1574 = vmatprep.subr.mxu0 0.0
        %1575 = vmatpush1.msra.mxu0 0.0
        %1576 = vmatprep.subr.mxu0 0.0
        %1577 = vmatpush1.msra.mxu0 0.0
        %1578 = vmatprep.subr.mxu0 0.0
        %1579 = vmatpush1.msra.mxu0 0.0
        %1580 = vmatprep.subr.mxu0 0.0
        %1581 = vmatpush1.msra.mxu0 0.0
        %1582 = vmatprep.subr.mxu0 0.0
        %1583 = vmatpush1.msra.mxu0 0.0
        %1584 = vmatprep.subr.mxu0 0.0
        %1585 = vmatpush1.msra.mxu0 0.0
        %1586 = vmatprep.subr.mxu0 0.0
        %1587 = vmatpush1.msra.mxu0 0.0
        %1588 = vmatprep.subr.mxu0 0.0
        %1589 = vmatpush1.msra.mxu0 0.0
        %1590 = vmatprep.subr.mxu0 0.0
        %1591 = vmatpush1.msra.mxu0 0.0
        %1592 = vmatprep.subr.mxu0 0.0
        %1593 = vmatpush1.msra.mxu0 0.0
        %1594 = vmatprep.subr.mxu0 0.0
        %1595 = vmatpush1.msra.mxu0 0.0
        %1596 = vmatprep.subr.mxu0 0.0
        %1597 = vmatpush1.msra.mxu0 0.0
        %1598 = vmatprep.subr.mxu0 0.0
        %1599 = vmatpush1.msra.mxu0 0.0
        %1600 = vmatprep.subr.mxu0 0.0
        %1601 = vmatpush1.msra.mxu0 0.0
        %1602 = vmatprep.subr.mxu0 0.0
        %1603 = vmatpush1.msra.mxu0 0.0
        %1604 = vmatprep.subr.mxu0 0.0
        %1605 = vmatpush1.msra.mxu0 0.0
        %1606 = vmatprep.subr.mxu0 0.0
        %1607 = vmatpush1.msra.mxu0 0.0
        %1608 = vmatprep.subr.mxu0 0.0
        %1609 = vmatpush1.msra.mxu0 0.0
        %1610 = vmatprep.subr.mxu0 0.0
        %1611 = vmatpush1.msra.mxu0 0.0
        %1612 = vmatprep.subr.mxu0 0.0
        %1613 = vmatpush1.msra.mxu0 0.0
        %1614 = vmatprep.subr.mxu0 0.0
        %1615 = vmatpush1.msra.mxu0 0.0
        %1616 = vmatprep.subr.mxu0 0.0
        %1617 = vmatpush1.msra.mxu0 0.0
        %1618 = vmatprep.subr.mxu0 0.0
        %1619 = vmatpush1.msra.mxu0 0.0
        %1620 = vmatprep.subr.mxu0 0.0
        %1621 = vmatpush1.msra.mxu0 0.0
        %1622 = vmatprep.subr.mxu0 0.0
        %1623 = vmatpush1.msra.mxu0 0.0
        %1624 = vmatprep.subr.mxu0 0.0
        %1625 = vmatpush1.msra.mxu0 0.0
        %1626 = vmatprep.subr.mxu0 0.0
        %1627 = vmatpush1.msra.mxu0 0.0
        %1628 = vmatprep.subr.mxu0 0.0
        %1629 = vmatpush1.msra.mxu0 0.0
        %1630 = vmatprep.subr.mxu0 0.0
        %1631 = vmatpush1.msra.mxu0 0.0
        %1632 = vmatprep.subr.mxu0 0.0
        %1633 = vmatpush1.msra.mxu0 0.0
        %1634 = vmatprep.mubr.f32.mxu0 0.0
        %1635 = vmatmul.mubr.f32.gmra.mrb[0].mxu0 %v1568
        %v1636 = vpop.f32.mrb[0].mxu0
        %v1637 = vadd.f32 0.0, %v1636
        %v1638 = vpop.f32.mrb[0].mxu0
        %1639 = vdwg.mxu0
        %v1640 = vcombine.low %v1418, %v1564
        %v1641 = vcombine.high %v1418, %v1564
        %v1643 = vunpack.c.l.s4 1983009808
        %v1644 = vunpack.c.0.s8 %v1643
        %v1645 = vlaneseq
        %v1646 = vshrl.u32 %v1645, 7
        %v1647 = vsub.s32 %v1644, %v1646
        %v1648 = vrot.slane %v1640, %v1647
        %v1650 = vunpack.c.l.s4 1983009808
        %v1651 = vunpack.c.0.s8 %v1650
        %v1652 = vlaneseq
        %v1653 = vshrl.u32 %v1652, 7
        %v1654 = vsub.s32 %v1651, %v1653
        %v1655 = vrot.slane %v1641, %v1654
        %v1656 = vcombine.low %v1491, %v1637
        %v1657 = vcombine.high %v1491, %v1637
        %v1659 = vunpack.c.l.s4 1983009808
        %v1660 = vunpack.c.0.s8 %v1659
        %v1661 = vlaneseq
        %v1662 = vshrl.u32 %v1661, 7
        %v1663 = vsub.s32 %v1660, %v1662
        %v1664 = vrot.slane %v1656, %v1663
        %v1666 = vunpack.c.l.s4 1983009808
        %v1667 = vunpack.c.0.s8 %v1666
        %v1668 = vlaneseq
        %v1669 = vshrl.u32 %v1668, 7
        %v1670 = vsub.s32 %v1667, %v1669
        %v1671 = vrot.slane %v1657, %v1670
        %v1672 = vcombine.low %v1648, %v1664
        %v1673 = vcombine.high %v1648, %v1664
        %v1675 = vunpack.c.l.s4 1934713408
        %v1676 = vunpack.c.0.s8 %v1675
        %v1677 = vlaneseq
        %v1678 = vshrl.u32 %v1677, 7
        %v1679 = vsub.s32 %v1676, %v1678
        %v1680 = vrot.slane %v1672, %v1679
        %v1682 = vunpack.c.l.s4 1934713408
        %v1683 = vunpack.c.0.s8 %v1682
        %v1684 = vlaneseq
        %v1685 = vshrl.u32 %v1684, 7
        %v1686 = vsub.s32 %v1683, %v1685
        %v1687 = vrot.slane %v1673, %v1686
        %v1688 = vcombine.low %v1655, %v1671
        %v1689 = vcombine.high %v1655, %v1671
        %v1691 = vunpack.c.l.s4 1934713408
        %v1692 = vunpack.c.0.s8 %v1691
        %v1693 = vlaneseq
        %v1694 = vshrl.u32 %v1693, 7
        %v1695 = vsub.s32 %v1692, %v1694
        %v1696 = vrot.slane %v1688, %v1695
        %v1698 = vunpack.c.l.s4 1934713408
        %v1699 = vunpack.c.0.s8 %v1698
        %v1700 = vlaneseq
        %v1701 = vshrl.u32 %v1700, 7
        %v1702 = vsub.s32 %v1699, %v1701
        %v1703 = vrot.slane %v1689, %v1702
        %v1704 = vcombine.high %v1680, 0.0
        %v1705 = vcombine.high %v1687, 0.0
        %v1706 = vcombine.high %v1696, 0.0
        %v1707 = vcombine.high %v1703, 0.0
        %v1708 = vcombine.low %v1680, %v1687
        %v1710 = vunpack.c.l.s4 1983009808
        %v1711 = vunpack.c.0.s8 %v1710
        %v1712 = vlaneseq
        %v1713 = vshrl.u32 %v1712, 7
        %v1714 = vsub.s32 %v1711, %v1713
        %v1715 = vrot.slane %v1708, %v1714
        %v1716 = vcombine.low %v1704, %v1705
        %v1718 = vunpack.c.l.s4 1983009808
        %v1719 = vunpack.c.0.s8 %v1718
        %v1720 = vlaneseq
        %v1721 = vshrl.u32 %v1720, 7
        %v1722 = vsub.s32 %v1719, %v1721
        %v1723 = vrot.slane %v1716, %v1722
        %v1724 = vcombine.low %v1696, %v1703
        %v1726 = vunpack.c.l.s4 1983009808
        %v1727 = vunpack.c.0.s8 %v1726
        %v1728 = vlaneseq
        %v1729 = vshrl.u32 %v1728, 7
        %v1730 = vsub.s32 %v1727, %v1729
        %v1731 = vrot.slane %v1724, %v1730
        %v1732 = vcombine.low %v1706, %v1707
        %v1734 = vunpack.c.l.s4 1983009808
        %v1735 = vunpack.c.0.s8 %v1734
        %v1736 = vlaneseq
        %v1737 = vshrl.u32 %v1736, 7
        %v1738 = vsub.s32 %v1735, %v1737
        %v1739 = vrot.slane %v1732, %v1738
        %v1740 = vcombine.low %v1715, %v1723
        %v1741 = vcombine.high %v1715, %v1723
        %v1743 = vunpack.c.l.s4 1934713408
        %v1744 = vunpack.c.0.s8 %v1743
        %v1745 = vlaneseq
        %v1746 = vshrl.u32 %v1745, 7
        %v1747 = vsub.s32 %v1744, %v1746
        %v1748 = vrot.slane %v1740, %v1747
        %v1750 = vunpack.c.l.s4 1934713408
        %v1751 = vunpack.c.0.s8 %v1750
        %v1752 = vlaneseq
        %v1753 = vshrl.u32 %v1752, 7
        %v1754 = vsub.s32 %v1751, %v1753
        %v1755 = vrot.slane %v1741, %v1754
        %v1756 = vcombine.low %v1731, %v1739
        %v1757 = vcombine.high %v1731, %v1739
        %v1759 = vunpack.c.l.s4 1934713408
        %v1760 = vunpack.c.0.s8 %v1759
        %v1761 = vlaneseq
        %v1762 = vshrl.u32 %v1761, 7
        %v1763 = vsub.s32 %v1760, %v1762
        %v1764 = vrot.slane %v1756, %v1763
        %v1766 = vunpack.c.l.s4 1934713408
        %v1767 = vunpack.c.0.s8 %v1766
        %v1768 = vlaneseq
        %v1769 = vshrl.u32 %v1768, 7
        %v1770 = vsub.s32 %v1767, %v1769
        %v1771 = vrot.slane %v1757, %v1770
        %v1772 = vcombine.low %v1748, %v1764
        %v1773 = vcombine.high %v1748, %v1764
        %v1774 = vcombine.low %v1755, %v1771
        %v1775 = vcombine.high %v1755, %v1771
        %1777 = vrot.lane.b32.xlu0 %v1773, 8
        %v1778 = vpop.permute.xlu0 %1777
        %1781 = vrot.lane.b32.xlu0 %v1774, 16
        %v1782 = vpop.permute.xlu0 %1781
        %1785 = vrot.lane.b32.xlu0 %v1775, 24
        %v1786 = vpop.permute.xlu0 %1785
        %v1788 = vsel %vm530, %v1772, %v1778
        %v1789 = vsel %vm532, %v1788, %v1782
        %v1790 = vsel %vm534, %v1789, %v1786
        %v1791 = vld [vmem:[#allocation7] sm:$0xff]
        %v1792 = vld [vmem:[#allocation7 + $0x8] sm:$0xff]
        %v1793 = vld [vmem:[#allocation7 + $0x10] sm:$0xff]
        %v1794 = vld [vmem:[#allocation7 + $0x18] sm:$0xff]
        %v1796 = vsel %vm303, %v1790, 0
        %1798 = vmatprep.subr.mxu0 0.0
        %1799 = vmatpush1.msra.mxu0 %v1791
        %1800 = vmatprep.subr.mxu0 0.0
        %1801 = vmatpush1.msra.mxu0 %v1792
        %1802 = vmatprep.subr.mxu0 0.0
        %1803 = vmatpush1.msra.mxu0 %v1793
        %1804 = vmatprep.subr.mxu0 0.0
        %1805 = vmatpush1.msra.mxu0 %v1794
        %1806 = vmatprep.subr.mxu0 0.0
        %1807 = vmatpush1.msra.mxu0 0.0
        %1808 = vmatprep.subr.mxu0 0.0
        %1809 = vmatpush1.msra.mxu0 0.0
        %1810 = vmatprep.subr.mxu0 0.0
        %1811 = vmatpush1.msra.mxu0 0.0
        %1812 = vmatprep.subr.mxu0 0.0
        %1813 = vmatpush1.msra.mxu0 0.0
        %1814 = vmatprep.subr.mxu0 0.0
        %1815 = vmatpush1.msra.mxu0 0.0
        %1816 = vmatprep.subr.mxu0 0.0
        %1817 = vmatpush1.msra.mxu0 0.0
        %1818 = vmatprep.subr.mxu0 0.0
        %1819 = vmatpush1.msra.mxu0 0.0
        %1820 = vmatprep.subr.mxu0 0.0
        %1821 = vmatpush1.msra.mxu0 0.0
        %1822 = vmatprep.subr.mxu0 0.0
        %1823 = vmatpush1.msra.mxu0 0.0
        %1824 = vmatprep.subr.mxu0 0.0
        %1825 = vmatpush1.msra.mxu0 0.0
        %1826 = vmatprep.subr.mxu0 0.0
        %1827 = vmatpush1.msra.mxu0 0.0
        %1828 = vmatprep.subr.mxu0 0.0
        %1829 = vmatpush1.msra.mxu0 0.0
        %1830 = vmatprep.subr.mxu0 0.0
        %1831 = vmatpush1.msra.mxu0 0.0
        %1832 = vmatprep.subr.mxu0 0.0
        %1833 = vmatpush1.msra.mxu0 0.0
        %1834 = vmatprep.subr.mxu0 0.0
        %1835 = vmatpush1.msra.mxu0 0.0
        %1836 = vmatprep.subr.mxu0 0.0
        %1837 = vmatpush1.msra.mxu0 0.0
        %1838 = vmatprep.subr.mxu0 0.0
        %1839 = vmatpush1.msra.mxu0 0.0
        %1840 = vmatprep.subr.mxu0 0.0
        %1841 = vmatpush1.msra.mxu0 0.0
        %1842 = vmatprep.subr.mxu0 0.0
        %1843 = vmatpush1.msra.mxu0 0.0
        %1844 = vmatprep.subr.mxu0 0.0
        %1845 = vmatpush1.msra.mxu0 0.0
        %1846 = vmatprep.subr.mxu0 0.0
        %1847 = vmatpush1.msra.mxu0 0.0
        %1848 = vmatprep.subr.mxu0 0.0
        %1849 = vmatpush1.msra.mxu0 0.0
        %1850 = vmatprep.subr.mxu0 0.0
        %1851 = vmatpush1.msra.mxu0 0.0
        %1852 = vmatprep.subr.mxu0 0.0
        %1853 = vmatpush1.msra.mxu0 0.0
        %1854 = vmatprep.subr.mxu0 0.0
        %1855 = vmatpush1.msra.mxu0 0.0
        %1856 = vmatprep.subr.mxu0 0.0
        %1857 = vmatpush1.msra.mxu0 0.0
        %1858 = vmatprep.subr.mxu0 0.0
        %1859 = vmatpush1.msra.mxu0 0.0
        %1860 = vmatprep.subr.mxu0 0.0
        %1861 = vmatpush1.msra.mxu0 0.0
        %1862 = vmatprep.mubr.f32.mxu0 0.0
        %1863 = vmatmul.mubr.f32.gmra.mrb[0].mxu0 %v1796
        %v1864 = vpop.f32.mrb[0].mxu0
        %v1865 = vadd.f32 0.0, %v1864
        %v1866 = vpop.f32.mrb[0].mxu0
        %1867 = vdwg.mxu0
        %1868 = vst.msk [vmem:[%s281] sm:$0xff] %vm303, %v1865
        %s1869 = sand.u32 %s142, 1
        %s1870 = scalar_lea.sflag [#allocation4], %s1869
        %s1871 = sand.u32 %s142, 1
        %s1872 = smul.addr %s1871, 8
        %s1873 = scalar_lea.vmem [#allocation10], %s1872
        // Predicated region
        $region57: #{tpu_custom_call.1} parent=39 // pred_check
          %p1874 = pneg %p152
        $region58: #{tpu_custom_call.1} parent=39 // pred_check_branch
          %1876 = sbr.rel (%p1874) target = $region60
        $region59: #{tpu_custom_call.1} parent=39 // pred_region
          %s1878 = ssub.s32 128, 128
          %1879 = vsyncadd %s1870, %s1878
          %s1880 = smul.addr %s24, 128
          %s1881 = scalar_lea.hbm %s5, %s1880
          %s1883 = sshll.u32 %s1873, 4
          %s1884 = int_to_ptr.vmem [resolvable:$true] %s1883
          %1886 = dma.vmem_to_hbm [thread:$0]  %s1884, 128, %s1881, %s1870
        $region60: #{tpu_custom_call.1} parent=39 // pred_fallthru
          _
      $region40: #{tpu_custom_call.1} parent=5 // pred_fallthru
        _
      %p1887 = scmp.le.s32.totalorder 2, %s19
      // Predicated region
      $region61: #{tpu_custom_call.1} parent=5 // pred_check
        %p1888 = pneg %p1887
      $region62: #{tpu_custom_call.1} parent=5 // pred_check_branch
        %1890 = sbr.rel (%p1888) target = $region64
      $region63: #{tpu_custom_call.1} parent=5 // pred_region
        %s1891 = ssub.s32 %s19, 2
        // Predicated region
        $region65: #{tpu_custom_call.1} parent=63 // pred_check
          %p1892 = pneg %p158
        $region66: #{tpu_custom_call.1} parent=63 // pred_check_branch
          %1894 = sbr.rel (%p1892) target = $region68
        $region67: #{tpu_custom_call.1} parent=63 // pred_region
          %s1895 = sand.u32 %s143, 1
          %s1896 = scalar_lea.sflag [#allocation4], %s1895
          %s1897 = sand.u32 %s143, 1
          %s1898 = smul.addr %s1897, 8
          %s1899 = scalar_lea.vmem [#allocation10], %s1898
          %1900 = dma.done %s1896, 128
        $region68: #{tpu_custom_call.1} parent=63 // pred_fallthru
          _
      $region64: #{tpu_custom_call.1} parent=5 // pred_fallthru
        _
    $region6: #{tpu_custom_call.1} parent=1 // loop_footer
      %s23 = sadd.s32 1, %s19
    $region7: #{tpu_custom_call.1} parent=1 // loop_footer_branch
      %18 = sbr.rel target = $region3
    $region8: #{tpu_custom_call.1} parent=1 // loop_exit
      _
    %1901 = vsyncpa [#allocation3], 1
    %s1902 = scalar_lea.sflag [#allocation3], 1
    %1903 = vsyncpa %s1902, 1
    %1904 = vsyncpa [#allocation6], 1
    %1905 = vsyncpa [#allocation9], 1
    %1906 = vsyncpa [#allocation4], 1
    %s1907 = scalar_lea.sflag [#allocation4], 1
    %1908 = vsyncpa %s1907, 1

</llo_original>
